<compile_context>
chip_gen: v7x
topology: tpu7x:2x2x1
jax: 0.10.0
libtpu: 0.0.40
codegen_flags: <defaults>
</compile_context>

<pallas_src>
import math

import jax
import jax.numpy as jnp
from jax import lax
from jax.experimental import pallas as pl
from jax.experimental.pallas import tpu as pltpu


# ----------------------------------------------------------------------------
# Pallas kernel: fused (nearest 2x upsample + 3x3 conv) on the low-res input,
# dy row taps pre-folded into channels, 3 dots with K = 3*Cin.
# ----------------------------------------------------------------------------
def _upconv2x_kernel(x_ref, w_ref, b_ref, o_ref):
    """One (batch, row-tile) block.

    x_ref : (1, TH, W+2, 3*Cin)  bf16 -- dy row taps folded into channels (halo-free row tiling)
    w_ref : (3, 3*Cin, 4*Cout)   bf16 -- dx-major phase-expanded conv weights
    b_ref : (1, 4*Cout)          f32
    o_ref : (1, TH, W, 4*Cout)   bf16 -- per-phase outputs (lane-dense last dim)
    """
    _, th, _, k3 = x_ref.shape
    _, _, w_out, c4 = o_ref.shape
    xt = x_ref[0]                                         # (TH, W+2, 3*Cin)

    # Hoist LHS preparation out of the accumulate chain so the three dots form an uninterrupted
    # accumulation (MRB accumulate on v7x, minimal accumulator read-modify-writes on v5e/v6e).
    lhs0 = xt[:, 0:w_out, :].reshape(th * w_out, k3)
    lhs1 = xt[:, 1:1 + w_out, :].reshape(th * w_out, k3)
    lhs2 = xt[:, 2:2 + w_out, :].reshape(th * w_out, k3)

    acc = jnp.dot(lhs0, w_ref[0], preferred_element_type=jnp.float32)
    acc = acc + jnp.dot(lhs1, w_ref[1], preferred_element_type=jnp.float32)
    acc = acc + jnp.dot(lhs2, w_ref[2], preferred_element_type=jnp.float32)
    acc = acc + b_ref[...]                                # f32 bias epilogue
    o_ref[0] = acc.reshape(th, w_out, c4).astype(o_ref.dtype)


# ----------------------------------------------------------------------------
# Weight phase expansion (wrapper-side, negligible cost)
# ----------------------------------------------------------------------------
def _phase_weights(w_oihw):
    """(Cout, Cin, 3, 3) torch-layout weight -> (3, 3*Cin, 4*Cout), dx-major, dy folded into K.

    For output phase ph in {0,1} (rows) and original tap ky in {0,1,2}, the upsampled-image tap
    lands on padded low-res row offset offs[ph, ky]; same for columns.  Summing original taps that
    hit the same low-res offset gives an exact single-conv equivalent of upsample(2x)+conv3x3.
    """
    cout, cin = w_oihw.shape[0], w_oihw.shape[1]
    w = jnp.transpose(w_oihw, (2, 3, 1, 0))                  # (ky, kx, Cin, Cout)
    offs = jnp.array([[0, 1, 1], [1, 1, 2]], jnp.int32)      # [phase, tap] -> padded offset
    sel = (offs[:, :, None] == jnp.arange(3)[None, None, :]).astype(w.dtype)   # (2, 3, 3)
    # Wbig[dy,dx,cin,ph,pw,co] = sum_{ky,kx} sel[ph,ky,dy] * sel[pw,kx,dx] * w[ky,kx,cin,co]
    wbig = jnp.einsum('pkd,qle,klio->deipqo', sel, sel, w)   # (dy, dx, Cin, 2, 2, Cout)
    wbig = wbig.reshape(3, 3, cin, 4 * cout)                 # (dy, dx, Cin, 4*Cout)
    # dx-major; (dy, Cin) merged into the contraction dim to match the wrapper's channel fold.
    return jnp.transpose(wbig, (1, 0, 2, 3)).reshape(3, 3 * cin, 4 * cout)


# ----------------------------------------------------------------------------
# VMEM-aware, generation-aware tile picking
# ----------------------------------------------------------------------------
def _vmem_capacity_bytes():
    try:
        cap = getattr(pltpu.get_tpu_info(), "vmem_capacity_bytes", None)
        if cap:
            return int(cap)
    except Exception:
        pass
    return 64 * 1024 * 1024                      # v7x-safe fallback


def _live_block_bytes(th, W, cin3, c4):
    in_blk = th * (W + 2) * cin3 * 2             # bf16 input block
    out_blk = th * W * c4 * 2                    # bf16 output block
    acc = th * W * c4 * 4                        # f32 accumulator
    lhs = 3 * th * W * cin3 * 2                  # sliced LHS copies (bf16)
    return 2 * (in_blk + out_blk) + acc + lhs    # 2x: double-buffered pipelined blocks


def _pick_tile_h(B, Hp, W, cin3, c4, budget_bytes):
    """Largest row tile dividing Hp that fits the budget and keeps >= 4 grid steps if possible."""
    divs = [d for d in range(1, Hp + 1) if Hp % d == 0]
    fits = [d for d in divs if _live_block_bytes(d, W, cin3, c4) <= budget_bytes] or [1]
    enough = [d for d in fits if B * (Hp // d) >= 4] or fits     # pipelining / 2 TCs on v7x
    mult8 = [d for d in enough if d % 8 == 0]
    return max(mult8) if mult8 else max(enough)


# ----------------------------------------------------------------------------
# Forward wrapper (matches torch Upsample.forward semantics, NCHW in / NCHW out)
# ----------------------------------------------------------------------------
def upsample_forward(x_nchw, w_oihw, bias):
    """conv3x3(pad=1)(nearest_upsample_2x(x)); x: (B,C,H,W), w: (C,C,3,3), bias: (C,)."""
    B, C, H, W = x_nchw.shape
    cout = w_oihw.shape[0]
    c4 = 4 * cout
    cin3 = 3 * C

    Hp = -(-H // 8) * 8                          # pad rows so a multiple-of-8 row tile exists

    # NHWC, bf16, zero-pad (rows: 1 top, 1 + (Hp-H) bottom; cols: 1/1), then fold the 3 dy row
    # taps into channels -> ONE kernel operand, halo-free row tiling, K = 3*Cin per MXU pass.
    x = jnp.transpose(x_nchw, (0, 2, 3, 1)).astype(jnp.bfloat16)
    xp = jnp.pad(x, ((0, 0), (1, 1 + (Hp - H)), (1, 1), (0, 0)))         # (B, Hp+2, W+2, C)
    xcat = jnp.concatenate([xp[:, dy:dy + Hp] for dy in range(3)], -1)   # (B, Hp, W+2, 3C)

    w9 = _phase_weights(w_oihw).astype(jnp.bfloat16)                     # (3, 3C, 4*Cout)
    b4 = jnp.tile(bias.astype(jnp.float32), 4).reshape(1, c4)            # (1, 4*Cout)

    vmem_cap = _vmem_capacity_bytes()
    th = _pick_tile_h(B, Hp, W, cin3, c4, int(0.55 * vmem_cap))
    grid = (B, Hp // th)

    blk_bytes = _live_block_bytes(th, W, cin3, c4) + w9.size * 2 + b4.size * 4
    vmem_limit = int(min(vmem_cap, max(blk_bytes + (8 << 20), 32 << 20)))

    flops = 2 * B * Hp * W * c4 * cin3 * 3                               # = 2*B*Hp*W*4C*9C
    bytes_accessed = xcat.size * 2 + w9.size * 2 + b4.size * 4 + B * Hp * W * c4 * 2
    cost = pl.CostEstimate(flops=flops, transcendentals=0, bytes_accessed=bytes_accessed)

    out4 = pl.pallas_call(
        _upconv2x_kernel,
        out_shape=jax.ShapeDtypeStruct((B, Hp, W, c4), jnp.bfloat16),
        grid=grid,
        in_specs=[
            pl.BlockSpec((1, th, W + 2, cin3), lambda b, i: (b, i, 0, 0)),
            pl.BlockSpec((3, cin3, c4), lambda b, i: (0, 0, 0)),
            pl.BlockSpec((1, c4), lambda b, i: (0, 0)),
        ],
        out_specs=pl.BlockSpec((1, th, W, c4), lambda b, i: (b, i, 0, 0)),
        compiler_params=pltpu.CompilerParams(
            dimension_semantics=("parallel", "parallel"),
            vmem_limit_bytes=vmem_limit),
        cost_estimate=cost,
    )(xcat, w9, b4)

    # Pixel-shuffle the 4 phases back to 2Hx2W and return NCHW f32 like the torch module.
    # reshape + transpose + reshape fuse into one XLA copy; it reads bf16 and writes f32.
    # TODO(synk): if downstream consumers accept NHWC bf16, return out4 re-shaped instead and
    # skip this transpose entirely (it is the only remaining full-output pass).
    out = out4[:, :H].reshape(B, H, W, 2, 2, cout)
    out = jnp.transpose(out, (0, 5, 1, 3, 2, 4)).reshape(B, cout, 2 * H, 2 * W)
    return out.astype(jnp.float32)


# ----------------------------------------------------------------------------
if __name__ == "__main__":
    B, C, H, W = 2, 64, 16, 16                   # Upsample(dim=64) at 16x16

    key = jax.random.PRNGKey(0)
    kx, kw, kb = jax.random.split(key, 3)
    x = jax.random.normal(kx, (B, C, H, W), jnp.float32)                 # NCHW
    w = jax.random.normal(kw, (C, C, 3, 3), jnp.float32) / math.sqrt(9 * C)
    b = 0.01 * jax.random.normal(kb, (C,), jnp.float32)

    out = jax.jit(upsample_forward)(x, w, b)
    jax.block_until_ready(out)
    assert out.shape == (B, C, 2 * H, 2 * W), out.shape
    assert bool(jnp.all(jnp.isfinite(out)))

    # Reference: explicit nearest-2x upsample then 3x3 conv (padding=1), full-precision XLA.
    up = jnp.repeat(jnp.repeat(x, 2, axis=2), 2, axis=3)
    ref = lax.conv_general_dilated(
        up, w, window_strides=(1, 1), padding=((1, 1), (1, 1)),
        dimension_numbers=('NCHW', 'OIHW', 'NCHW'),
        precision=lax.Precision.HIGHEST) + b[None, :, None, None]
    err = float(jnp.max(jnp.abs(out - ref)))
    assert err < 6e-2, f"max abs err {err}"      # bf16-operand / f32-accumulate / bf16-store tol

    print("KERNEL_OK")
</pallas_src>

<mosaic_0001>
module attributes {stable_mosaic.version = 11 : i64} {
  func.func @_upconv2x_kernel(%arg0: i32, %arg1: i32, %arg2: memref<1x8x18x192xbf16, #tpu.memory_space<vmem>>, %arg3: memref<3x192x256xbf16, #tpu.memory_space<vmem>>, %arg4: memref<1x256xf32, #tpu.memory_space<vmem>>, %arg5: memref<1x8x16x256xbf16, #tpu.memory_space<vmem>>) attributes {dimension_semantics = [#tpu.dimension_semantics<parallel>, #tpu.dimension_semantics<parallel>], iteration_bounds = array<i64: 2, 2>, scalar_prefetch = 0 : i64, scratch_operands = 0 : i64, tpu.core_type = #tpu.core_type<tc>, window_params = [{transform_indices = @transform_0, window_bounds = array<i64: 1, 8, 18, 192>}, {pipeline_mode = #tpu.pipeline_mode<synchronous>, transform_indices = @transform_1, window_bounds = array<i64: 3, 192, 256>}, {pipeline_mode = #tpu.pipeline_mode<synchronous>, transform_indices = @transform_2, window_bounds = array<i64: 1, 256>}, {transform_indices = @transform_3, window_bounds = array<i64: 1, 8, 16, 256>}]} {
    %c0 = arith.constant 0 : index
    %c0_0 = arith.constant 0 : index
    %c0_1 = arith.constant 0 : index
    %c0_2 = arith.constant 0 : index
    %0 = vector.load %arg2[%c0, %c0_0, %c0_1, %c0_2] : memref<1x8x18x192xbf16, #tpu.memory_space<vmem>>, vector<1x8x18x192xbf16>
    %1 = vector.shape_cast %0 : vector<1x8x18x192xbf16> to vector<8x18x192xbf16>
    %2 = vector.extract_strided_slice %1 {offsets = [0, 0, 0], sizes = [8, 16, 192], strides = [1, 1, 1]} : vector<8x18x192xbf16> to vector<8x16x192xbf16>
    %3 = vector.shape_cast %2 : vector<8x16x192xbf16> to vector<128x192xbf16>
    %4 = vector.extract_strided_slice %1 {offsets = [0, 1, 0], sizes = [8, 16, 192], strides = [1, 1, 1]} : vector<8x18x192xbf16> to vector<8x16x192xbf16>
    %5 = vector.shape_cast %4 : vector<8x16x192xbf16> to vector<128x192xbf16>
    %6 = vector.extract_strided_slice %1 {offsets = [0, 2, 0], sizes = [8, 16, 192], strides = [1, 1, 1]} : vector<8x18x192xbf16> to vector<8x16x192xbf16>
    %7 = vector.shape_cast %6 : vector<8x16x192xbf16> to vector<128x192xbf16>
    %c0_3 = arith.constant 0 : index
    %c0_4 = arith.constant 0 : index
    %c0_5 = arith.constant 0 : index
    %8 = vector.load %arg3[%c0_3, %c0_4, %c0_5] : memref<3x192x256xbf16, #tpu.memory_space<vmem>>, vector<1x192x256xbf16>
    %9 = vector.shape_cast %8 : vector<1x192x256xbf16> to vector<192x256xbf16>
    %cst = arith.constant dense<0.000000e+00> : vector<128x256xf32>
    %10 = tpu.matmul %3, %9, %cst {dimension_numbers = #tpu.dot_dimension_numbers<[1], [0], [0], [1], [0, 0, 1, 1], [], []>} : vector<128x192xbf16>, vector<192x256xbf16>, vector<128x256xf32> -> vector<128x256xf32>
    %c1 = arith.constant 1 : index
    %c0_6 = arith.constant 0 : index
    %c0_7 = arith.constant 0 : index
    %11 = vector.load %arg3[%c1, %c0_6, %c0_7] : memref<3x192x256xbf16, #tpu.memory_space<vmem>>, vector<1x192x256xbf16>
    %12 = vector.shape_cast %11 : vector<1x192x256xbf16> to vector<192x256xbf16>
    %cst_8 = arith.constant dense<0.000000e+00> : vector<128x256xf32>
    %13 = tpu.matmul %5, %12, %cst_8 {dimension_numbers = #tpu.dot_dimension_numbers<[1], [0], [0], [1], [0, 0, 1, 1], [], []>} : vector<128x192xbf16>, vector<192x256xbf16>, vector<128x256xf32> -> vector<128x256xf32>
    %14 = arith.addf %10, %13 : vector<128x256xf32>
    %c2 = arith.constant 2 : index
    %c0_9 = arith.constant 0 : index
    %c0_10 = arith.constant 0 : index
    %15 = vector.load %arg3[%c2, %c0_9, %c0_10] : memref<3x192x256xbf16, #tpu.memory_space<vmem>>, vector<1x192x256xbf16>
    %16 = vector.shape_cast %15 : vector<1x192x256xbf16> to vector<192x256xbf16>
    %cst_11 = arith.constant dense<0.000000e+00> : vector<128x256xf32>
    %17 = tpu.matmul %7, %16, %cst_11 {dimension_numbers = #tpu.dot_dimension_numbers<[1], [0], [0], [1], [0, 0, 1, 1], [], []>} : vector<128x192xbf16>, vector<192x256xbf16>, vector<128x256xf32> -> vector<128x256xf32>
    %18 = arith.addf %14, %17 : vector<128x256xf32>
    %c0_12 = arith.constant 0 : index
    %c0_13 = arith.constant 0 : index
    %19 = vector.load %arg4[%c0_12, %c0_13] : memref<1x256xf32, #tpu.memory_space<vmem>>, vector<1x256xf32>
    %20 = vector.broadcast %19 : vector<1x256xf32> to vector<128x256xf32>
    %21 = arith.addf %18, %20 : vector<128x256xf32>
    %22 = vector.shape_cast %21 : vector<128x256xf32> to vector<8x16x256xf32>
    %23 = arith.truncf %22 : vector<8x16x256xf32> to vector<8x16x256xbf16>
    %c0_14 = arith.constant 0 : index
    %c0_15 = arith.constant 0 : index
    %c0_16 = arith.constant 0 : index
    %c0_17 = arith.constant 0 : index
    %24 = vector.load %arg5[%c0_14, %c0_15, %c0_16, %c0_17] : memref<1x8x16x256xbf16, #tpu.memory_space<vmem>>, vector<1x8x16x256xbf16>
    %25 = vector.shape_cast %24 : vector<1x8x16x256xbf16> to vector<8x16x256xbf16>
    %26 = vector.shape_cast %23 : vector<8x16x256xbf16> to vector<1x8x16x256xbf16>
    tpu.vector_store %arg5[%c0_14, %c0_15, %c0_16, %c0_17], %26 {strides = array<i32>} : memref<1x8x16x256xbf16, #tpu.memory_space<vmem>>, vector<1x8x16x256xbf16>,
    return
  }
  func.func @transform_0(%arg0: i32, %arg1: i32) -> (i32, i32, i32, i32) {
    %c0_i32 = arith.constant 0 : i32
    %c0_i32_0 = arith.constant 0 : i32
    %c0_i32_1 = arith.constant 0 : i32
    return %arg0, %arg1, %c0_i32, %c0_i32_0 : i32, i32, i32, i32
  }
  func.func @transform_1(%arg0: i32, %arg1: i32) -> (i32, i32, i32) {
    %c0_i32 = arith.constant 0 : i32
    %c0_i32_0 = arith.constant 0 : i32
    %c0_i32_1 = arith.constant 0 : i32
    %c0_i32_2 = arith.constant 0 : i32
    return %c0_i32, %c0_i32_0, %c0_i32_1 : i32, i32, i32
  }
  func.func @transform_2(%arg0: i32, %arg1: i32) -> (i32, i32) {
    %c0_i32 = arith.constant 0 : i32
    %c0_i32_0 = arith.constant 0 : i32
    %c0_i32_1 = arith.constant 0 : i32
    return %c0_i32, %c0_i32_0 : i32, i32
  }
  func.func @transform_3(%arg0: i32, %arg1: i32) -> (i32, i32, i32, i32) {
    %c0_i32 = arith.constant 0 : i32
    %c0_i32_0 = arith.constant 0 : i32
    %c0_i32_1 = arith.constant 0 : i32
    return %arg0, %arg1, %c0_i32, %c0_i32_0 : i32, i32, i32, i32
  }
}

</mosaic_0001>

<llo_original>
// kernel: tile.8
$region0: #{tile.8}
  #allocation0 [shape = 's32[1]{0}', space=sflag, size = 0x4, scoped, tag = 'scoped memory for tile.8']
  %s0 = inlined_call_operand.vmem [shape: f32[64], index: 0, kind: input, shape index: {}]
  %s1 = inlined_call_operand.vmem [shape: f32[4,64], index: 1, kind: output, shape index: {}]
  // Predicated region
  $region2: #{tile.8} parent=0 // pred_check
    _
  $region3: #{tile.8} parent=0 // pred_check_branch
    %3 = sbr.rel (0) target = $region5
  $region4: #{tile.8} parent=0 // pred_region
    _
  $region5: #{tile.8} parent=0 // pred_fallthru
    _
  %v4 = vld [vmem:[%s0] ss:$0 sm:$0xff]
  %5 = vst [vmem:[%s1] sm:$0xf] %v4

// kernel: tile.9
$region0: #{tile.9}
  %s0 = inlined_call_operand.vmem [shape: f32[4,64], index: 0, kind: input, shape index: {}]
  %s1 = inlined_call_operand.vmem [shape: f32[1,256], index: 1, kind: output, shape index: {}]
  $region1: #{tile.9} parent=0
    #allocation0 [shape = 'u8[8192]{0}', space=vmem, size = 0x2000, scoped, tag = 'scoped mem for output reshape']
    #allocation1 [shape = 'u8[4096]{0}', space=vmem, size = 0x1000, scoped, tag = 'scoped mem for input reshape']
    %s3 = sshllo.u32 0, 4
    %v4 = vld [vmem:[%s0] sm:%s3]
    %5 = vst [vmem:[#allocation1] sm:%s3] %v4
    %s6 = smov 3
    %v7 = vld [vmem:[#allocation1] ss:$2 sm:%s6]
    %vm8 = vcmask 523264
    %9 = vst.msk [vmem:[#allocation0] ss:$8 sm:$0x3] %vm8, %v7
    %s10 = scalar_lea.vmem [#allocation1], 1
    %s11 = smov 3
    %v12 = vld [vmem:[%s10] ss:$2 sm:%s11]
    %13 = vrot.lane.b32.xlu0 %v12, 64
    %v14 = vpop.permute.xlu0 %13
    %vm15 = vcmask 1048064
    %16 = vst.msk [vmem:[#allocation0] ss:$8 sm:$0x3] %vm15, %v14
    %s18 = sshllo.u32 0, 1
    %v20 = vld [vmem:[#allocation0] sm:%s18]
    %s21 = sshllo.u32 0, 1
    %22 = vst [vmem:[%s1] sm:%s21] %v20
    %s23 = scalar_lea.vmem [#allocation0], 8
    %v24 = vld [vmem:[%s23] sm:%s18]
    %s25 = sshllo.u32 0, 1
    %s26 = scalar_lea.vmem %s1, 1
    %27 = vst [vmem:[%s26] sm:%s25] %v24

// kernel: upsample_forward.1
$region0: #{upsample_forward.1}
  #allocation0 [shape = 'u32[]', space=smem, size = 0x4, offset = 0x4, fixed_abs, tag = 'smem constant byte address 0x4 - core index']
  #allocation1 [shape = 'u32[144,128]{1,0:T(1,128)}', space=vmem, size = 0x12000, scoped, tag = 'internal scratch']
  %s0 = inlined_call_operand.vmem [shape: bf16[2,16,18,192], index: 0, kind: input, shape index: {}]
  %s1 = inlined_call_operand.vmem [shape: bf16[3,192,256], index: 1, kind: input, shape index: {}]
  %s2 = inlined_call_operand.vmem [shape: f32[1,256], index: 2, kind: input, shape index: {}]
  %s3 = inlined_call_operand.vmem [shape: bf16[2,16,16,256], index: 3, kind: output, shape index: {}]
  %s4 = sld [smem:[#allocation0]]
  $region45: #{upsample_forward.1} parent=0
    _
  %s6 = ssub.s32 1, %s4
  %s7 = scalar_select 0, %s6, %s4
  loop: start=0, step=1, limit=6
  $region2: #{upsample_forward.1} parent=0 // loop_pre_header
    _
  $region3: #{upsample_forward.1} parent=0 // loop_header
    %s9 = sphi 0, %s13
    %p10 = scmp.ge.s32.totalorder %s9, 6
    %s16 = sphi 0, %s28
    %s17 = sphi 0, %s24
    %s18 = sphi 0, %s16
    %s19 = sphi 0, %s17
    %s20 = sphi 0, %s18
    %s21 = sphi 0, %s19
    %s33 = sphi 0, %s35
    %s36 = sphi 0, %s33
    %s37 = sphi 0, %s36
    %s53 = sphi 0, %s37
    %s57 = sphi 0, %s57
    %s59 = sphi 0, %s57
    %s60 = sphi 0, %s59
    %s74 = sphi 0, %s60
    %s78 = sphi 0, %s78
    %s80 = sphi 0, %s78
    %s81 = sphi 0, %s80
    %s95 = sphi 0, %s81
    %s103 = sphi 0, %s105
    %s106 = sphi 0, %s103
    %s107 = sphi 0, %s106
    %s123 = sphi 0, %s107
  $region4: #{upsample_forward.1} parent=0 // loop_header_branch
    %12 = sbr.rel (%p10) target = $region8
  $region5: #{upsample_forward.1} parent=0 // loop_body
    %s14 = ssub.s32 %s9, 1
    %s15 = ssub.s32 %s9, 2
    %s22 = sadd.s32 1, %s17
    %p23 = scmp.ge.s32.totalorder %s22, 2
    %s24 = scalar_select %p23, 0, %s22
    %s25 = sadd.s32 1, %s16
    %s26 = scalar_select %p23, %s25, %s16
    %p27 = scmp.ge.s32.totalorder %s26, 2
    %s28 = scalar_select %p27, 0, %s26
    %s29 = ssub.s32 %s16, %s28
    %s30 = ssub.s32 %s17, %s24
    %s31 = sor.u32 %s29, %s30
    %p32 = scmp.eq.s32.totalorder %s31, 0
    %s34 = sadd.s32 %s33, 1
    %s35 = scalar_select %p32, %s33, %s34
    %p38 = pneg %p32
    %p39 = scmp.eq.s32.totalorder %s9, 3
    %p40 = por %p38, %p39
    %p41 = scmp.ne.s32.totalorder %s33, %s36
    %p42 = scmp.eq.s32.totalorder %s9, 0
    %p43 = por %p41, %p42
    %p44 = scmp.ne.s32.totalorder %s33, %s36
    %p45 = scmp.eq.s32.totalorder %s14, 3
    %p46 = por %p44, %p45
    %p47 = scmp.ne.s32.totalorder %s36, %s37
    %p48 = scmp.eq.s32.totalorder %s14, 0
    %p49 = por %p47, %p48
    %p50 = scmp.ne.s32.totalorder %s36, %s37
    %p51 = scmp.eq.s32.totalorder %s15, 3
    %p52 = por %p50, %p51
    %p54 = scmp.ne.s32.totalorder %s37, %s53
    %p55 = scmp.eq.s32.totalorder %s15, 0
    %p56 = por %p54, %p55
    %s58 = sadd.s32 %s57, 1
    %p61 = scmp.eq.s32.totalorder %s9, 3
    %p62 = scmp.ne.s32.totalorder %s57, %s59
    %p63 = scmp.eq.s32.totalorder %s9, 0
    %p64 = por %p62, %p63
    %p65 = scmp.ne.s32.totalorder %s57, %s59
    %p66 = scmp.eq.s32.totalorder %s14, 3
    %p67 = por %p65, %p66
    %p68 = scmp.ne.s32.totalorder %s59, %s60
    %p69 = scmp.eq.s32.totalorder %s14, 0
    %p70 = por %p68, %p69
    %p71 = scmp.ne.s32.totalorder %s59, %s60
    %p72 = scmp.eq.s32.totalorder %s15, 3
    %p73 = por %p71, %p72
    %p75 = scmp.ne.s32.totalorder %s60, %s74
    %p76 = scmp.eq.s32.totalorder %s15, 0
    %p77 = por %p75, %p76
    %s79 = sadd.s32 %s78, 1
    %p82 = scmp.eq.s32.totalorder %s9, 3
    %p83 = scmp.ne.s32.totalorder %s78, %s80
    %p84 = scmp.eq.s32.totalorder %s9, 0
    %p85 = por %p83, %p84
    %p86 = scmp.ne.s32.totalorder %s78, %s80
    %p87 = scmp.eq.s32.totalorder %s14, 3
    %p88 = por %p86, %p87
    %p89 = scmp.ne.s32.totalorder %s80, %s81
    %p90 = scmp.eq.s32.totalorder %s14, 0
    %p91 = por %p89, %p90
    %p92 = scmp.ne.s32.totalorder %s80, %s81
    %p93 = scmp.eq.s32.totalorder %s15, 3
    %p94 = por %p92, %p93
    %p96 = scmp.ne.s32.totalorder %s81, %s95
    %p97 = scmp.eq.s32.totalorder %s15, 0
    %p98 = por %p96, %p97
    %s99 = ssub.s32 %s16, %s28
    %s100 = ssub.s32 %s17, %s24
    %s101 = sor.u32 %s99, %s100
    %p102 = scmp.eq.s32.totalorder %s101, 0
    %s104 = sadd.s32 %s103, 1
    %s105 = scalar_select %p102, %s103, %s104
    %p108 = pneg %p102
    %p109 = scmp.eq.s32.totalorder %s9, 3
    %p110 = por %p108, %p109
    %p111 = scmp.ne.s32.totalorder %s103, %s106
    %p112 = scmp.eq.s32.totalorder %s9, 0
    %p113 = por %p111, %p112
    %p114 = scmp.ne.s32.totalorder %s103, %s106
    %p115 = scmp.eq.s32.totalorder %s14, 3
    %p116 = por %p114, %p115
    %p117 = scmp.ne.s32.totalorder %s106, %s107
    %p118 = scmp.eq.s32.totalorder %s14, 0
    %p119 = por %p117, %p118
    %p120 = scmp.ne.s32.totalorder %s106, %s107
    %p121 = scmp.eq.s32.totalorder %s15, 3
    %p122 = por %p120, %p121
    %p124 = scmp.ne.s32.totalorder %s107, %s123
    %p125 = scmp.eq.s32.totalorder %s15, 0
    %p126 = por %p124, %p125
    %p127 = scmp.le.s32.totalorder 1, %s9
    %p128 = scmp.lt.s32.totalorder %s9, 5
    %p129 = pnand %p127, %p128
    %p130 = pneg %p129
    // Predicated region
    $region9: #{upsample_forward.1} parent=5 // pred_check
      _
    $region10: #{upsample_forward.1} parent=5 // pred_check_branch
      %132 = sbr.rel (%p129) target = $region12
    $region11: #{upsample_forward.1} parent=5 // pred_region
      %s133 = ssub.s32 %s9, 1
      // Predicated region
      $region13: #{upsample_forward.1} parent=11 // pred_check
        %p134 = pneg %p70
      $region14: #{upsample_forward.1} parent=11 // pred_check_branch
        %136 = sbr.rel (%p134) target = $region16
      $region15: #{upsample_forward.1} parent=11 // pred_region
        _
      $region16: #{upsample_forward.1} parent=11 // pred_fallthru
        _
      // Predicated region
      $region17: #{upsample_forward.1} parent=11 // pred_check
        %p137 = pneg %p91
      $region18: #{upsample_forward.1} parent=11 // pred_check_branch
        %139 = sbr.rel (%p137) target = $region20
      $region19: #{upsample_forward.1} parent=11 // pred_region
        _
      $region20: #{upsample_forward.1} parent=11 // pred_fallthru
        _
    $region12: #{upsample_forward.1} parent=5 // pred_fallthru
      _
    %p140 = scmp.lt.s32.totalorder %s9, 4
    // Predicated region
    $region21: #{upsample_forward.1} parent=5 // pred_check
      %p141 = pneg %p140
    $region22: #{upsample_forward.1} parent=5 // pred_check_branch
      %143 = sbr.rel (%p141) target = $region24
    $region23: #{upsample_forward.1} parent=5 // pred_region
      // Predicated region
      $region25: #{upsample_forward.1} parent=23 // pred_check
        %p144 = pneg %p43
      $region26: #{upsample_forward.1} parent=23 // pred_check_branch
        %146 = sbr.rel (%p144) target = $region28
      $region27: #{upsample_forward.1} parent=23 // pred_region
        %s147 = smul.u32 8, %s17
        %p148 = scmp.lt.s32.totalorder %s16, 1
        %s149 = scalar_select %p148, %s16, 1
        %p150 = scmp.lt.s32.totalorder %s147, 15
        %s151 = scalar_select %p150, %s147, 15
        %s152 = smul.addr %s151, 6
        %s153 = smul.addr %s149, 96
        %s154 = sadd.s32 %s152, %s153
        %s155 = smul.addr %s154, 4
        %s156 = scalar_lea.vmem %s0, %s155
        %s157 = smul.u32 8, %s17
      $region28: #{upsample_forward.1} parent=23 // pred_fallthru
        _
    $region24: #{upsample_forward.1} parent=5 // pred_fallthru
      _
    %p158 = scmp.le.s32.totalorder 1, %s9
    %p159 = scmp.lt.s32.totalorder %s9, 5
    %p160 = pnand %p158, %p159
    %p161 = pneg %p160
    // Predicated region
    $region29: #{upsample_forward.1} parent=5 // pred_check
      _
    $region30: #{upsample_forward.1} parent=5 // pred_check_branch
      %163 = sbr.rel (%p160) target = $region32
    $region31: #{upsample_forward.1} parent=5 // pred_region
      %s164 = ssub.s32 %s9, 1
      %s165 = smul.u32 8, %s19
      %p166 = scmp.lt.s32.totalorder %s18, 1
      %s167 = scalar_select %p166, %s18, 1
      %p168 = scmp.lt.s32.totalorder %s165, 15
      %s169 = scalar_select %p168, %s165, 15
      %s170 = smul.addr %s169, 6
      %s171 = smul.addr %s167, 96
      %s172 = sadd.s32 %s170, %s171
      %s173 = smul.addr %s172, 4
      %s174 = scalar_lea.vmem %s0, %s173
      %p175 = pneg %p49
      %p176 = pneg %p46
      %p177 = pneg %p70
      %p178 = pneg %p67
      %p179 = pneg %p91
      %p180 = pneg %p88
      %p181 = pneg %p119
      %p182 = pneg %p116
      %s183 = smul.u32 8, %s19
      %p184 = scmp.lt.s32.totalorder %s18, 1
      %s185 = scalar_select %p184, %s18, 1
      %p186 = scmp.lt.s32.totalorder %s183, 15
      %s187 = scalar_select %p186, %s183, 15
      %s188 = smul.addr %s187, 4
      %s189 = smul.addr %s185, 64
      %s190 = sadd.s32 %s188, %s189
      %s191 = smul.addr %s190, 4
      %s192 = scalar_lea.vmem %s3, %s191
      %s193 = smul.u32 8, %s19
      %p194 = scmp.lt.s32.totalorder %s18, 1
      %s195 = scalar_select %p194, %s18, 1
      %p196 = scmp.lt.s32.totalorder %s193, 15
      %s197 = scalar_select %p196, %s193, 15
      %s198 = smul.addr %s197, 6
      %s199 = smul.addr %s195, 96
      %s200 = sadd.s32 %s198, %s199
      %s201 = smul.addr %s200, 4
      %s202 = scalar_lea.vmem %s0, %s201
      %s203 = smul.u32 8, %s19
      %s204 = smul.u32 8, %s19
      %p205 = scmp.lt.s32.totalorder %s18, 1
      %s206 = scalar_select %p205, %s18, 1
      %p207 = scmp.lt.s32.totalorder %s204, 15
      %s208 = scalar_select %p207, %s204, 15
      %s209 = smul.addr %s208, 4
      %s210 = smul.addr %s206, 64
      %s211 = sadd.s32 %s209, %s210
      %s212 = smul.addr %s211, 4
      %s213 = scalar_lea.vmem %s3, %s212
      %s214 = smul.u32 8, %s19
      %v216 = vld [vmem:[%s202] sm:$0xff]
      %v217 = vld [vmem:[%s202 + $0x8] sm:$0xff]
      %v218 = vld [vmem:[%s202 + $0x10] sm:$0x11]
      %v219 = vld [vmem:[%s202 + $0x18] sm:$0xff]
      %v220 = vld [vmem:[%s202 + $0x20] sm:$0xff]
      %v221 = vld [vmem:[%s202 + $0x28] sm:$0x11]
      %v222 = vld [vmem:[%s202 + $0x30] sm:$0xff]
      %v223 = vld [vmem:[%s202 + $0x38] sm:$0xff]
      %v224 = vld [vmem:[%s202 + $0x40] sm:$0x11]
      %v225 = vld [vmem:[%s202 + $0x48] sm:$0xff]
      %v226 = vld [vmem:[%s202 + $0x50] sm:$0xff]
      %v227 = vld [vmem:[%s202 + $0x58] sm:$0x11]
      %v228 = vld [vmem:[%s202 + $0x60] sm:$0xff]
      %v229 = vld [vmem:[%s202 + $0x68] sm:$0xff]
      %v230 = vld [vmem:[%s202 + $0x70] sm:$0x11]
      %v231 = vld [vmem:[%s202 + $0x78] sm:$0xff]
      %v232 = vld [vmem:[%s202 + $0x80] sm:$0xff]
      %v233 = vld [vmem:[%s202 + $0x88] sm:$0x11]
      %v234 = vld [vmem:[%s202 + $0x90] sm:$0xff]
      %v235 = vld [vmem:[%s202 + $0x98] sm:$0xff]
      %v236 = vld [vmem:[%s202 + $0xa0] sm:$0x11]
      %v237 = vld [vmem:[%s202 + $0xa8] sm:$0xff]
      %v238 = vld [vmem:[%s202 + $0xb0] sm:$0xff]
      %v239 = vld [vmem:[%s202 + $0xb8] sm:$0x11]
      %vm240 = vsmask.f32 3328
      %vm241 = vsmask.f32 7440
      %vm242 = vmor %vm240, %vm241
      %v244 = vshrl.u32 %v216, 16
      %v246 = vrot.slane %v244, 4
      %v247 = vshll.u32 %v216, 16
      %v249 = vrot.slane %v247, 5
      %v250 = vor.u32 %v246, %v249
      %v251 = vrot.slane %v250, 4
      %v253 = vshll.u32 %v217, 16
      %v255 = vrot.slane %v253, 5
      %v256 = vsel %vm242, %v251, %v255
      %v257 = vshrl.u32 %v217, 16
      %v259 = vrot.slane %v257, 4
      %v260 = vor.u32 %v259, %v255
      %v261 = vrot.slane %v260, 4
      %v263 = vshll.u32 %v218, 16
      %v265 = vrot.slane %v263, 5
      %v266 = vsel %vm242, %v261, %v265
      %v268 = vshrl.u32 %v219, 16
      %v270 = vrot.slane %v268, 4
      %v271 = vshll.u32 %v219, 16
      %v273 = vrot.slane %v271, 5
      %v274 = vor.u32 %v270, %v273
      %v275 = vrot.slane %v274, 4
      %v277 = vshll.u32 %v220, 16
      %v279 = vrot.slane %v277, 5
      %v280 = vsel %vm242, %v275, %v279
      %v281 = vshrl.u32 %v220, 16
      %v283 = vrot.slane %v281, 4
      %v284 = vor.u32 %v283, %v279
      %v285 = vrot.slane %v284, 4
      %v287 = vshll.u32 %v221, 16
      %v289 = vrot.slane %v287, 5
      %v290 = vsel %vm242, %v285, %v289
      %v292 = vshrl.u32 %v222, 16
      %v294 = vrot.slane %v292, 4
      %v295 = vshll.u32 %v222, 16
      %v297 = vrot.slane %v295, 5
      %v298 = vor.u32 %v294, %v297
      %v299 = vrot.slane %v298, 4
      %v301 = vshll.u32 %v223, 16
      %v303 = vrot.slane %v301, 5
      %v304 = vsel %vm242, %v299, %v303
      %v305 = vshrl.u32 %v223, 16
      %v307 = vrot.slane %v305, 4
      %v308 = vor.u32 %v307, %v303
      %v309 = vrot.slane %v308, 4
      %v311 = vshll.u32 %v224, 16
      %v313 = vrot.slane %v311, 5
      %v314 = vsel %vm242, %v309, %v313
      %v316 = vshrl.u32 %v225, 16
      %v318 = vrot.slane %v316, 4
      %v319 = vshll.u32 %v225, 16
      %v321 = vrot.slane %v319, 5
      %v322 = vor.u32 %v318, %v321
      %v323 = vrot.slane %v322, 4
      %v325 = vshll.u32 %v226, 16
      %v327 = vrot.slane %v325, 5
      %v328 = vsel %vm242, %v323, %v327
      %v329 = vshrl.u32 %v226, 16
      %v331 = vrot.slane %v329, 4
      %v332 = vor.u32 %v331, %v327
      %v333 = vrot.slane %v332, 4
      %v335 = vshll.u32 %v227, 16
      %v337 = vrot.slane %v335, 5
      %v338 = vsel %vm242, %v333, %v337
      %v340 = vshrl.u32 %v228, 16
      %v342 = vrot.slane %v340, 4
      %v343 = vshll.u32 %v228, 16
      %v345 = vrot.slane %v343, 5
      %v346 = vor.u32 %v342, %v345
      %v347 = vrot.slane %v346, 4
      %v349 = vshll.u32 %v229, 16
      %v351 = vrot.slane %v349, 5
      %v352 = vsel %vm242, %v347, %v351
      %v353 = vshrl.u32 %v229, 16
      %v355 = vrot.slane %v353, 4
      %v356 = vor.u32 %v355, %v351
      %v357 = vrot.slane %v356, 4
      %v359 = vshll.u32 %v230, 16
      %v361 = vrot.slane %v359, 5
      %v362 = vsel %vm242, %v357, %v361
      %v364 = vshrl.u32 %v231, 16
      %v366 = vrot.slane %v364, 4
      %v367 = vshll.u32 %v231, 16
      %v369 = vrot.slane %v367, 5
      %v370 = vor.u32 %v366, %v369
      %v371 = vrot.slane %v370, 4
      %v373 = vshll.u32 %v232, 16
      %v375 = vrot.slane %v373, 5
      %v376 = vsel %vm242, %v371, %v375
      %v377 = vshrl.u32 %v232, 16
      %v379 = vrot.slane %v377, 4
      %v380 = vor.u32 %v379, %v375
      %v381 = vrot.slane %v380, 4
      %v383 = vshll.u32 %v233, 16
      %v385 = vrot.slane %v383, 5
      %v386 = vsel %vm242, %v381, %v385
      %v388 = vshrl.u32 %v234, 16
      %v390 = vrot.slane %v388, 4
      %v391 = vshll.u32 %v234, 16
      %v393 = vrot.slane %v391, 5
      %v394 = vor.u32 %v390, %v393
      %v395 = vrot.slane %v394, 4
      %v397 = vshll.u32 %v235, 16
      %v399 = vrot.slane %v397, 5
      %v400 = vsel %vm242, %v395, %v399
      %v401 = vshrl.u32 %v235, 16
      %v403 = vrot.slane %v401, 4
      %v404 = vor.u32 %v403, %v399
      %v405 = vrot.slane %v404, 4
      %v407 = vshll.u32 %v236, 16
      %v409 = vrot.slane %v407, 5
      %v410 = vsel %vm242, %v405, %v409
      %v412 = vshrl.u32 %v237, 16
      %v414 = vrot.slane %v412, 4
      %v415 = vshll.u32 %v237, 16
      %v417 = vrot.slane %v415, 5
      %v418 = vor.u32 %v414, %v417
      %v419 = vrot.slane %v418, 4
      %v421 = vshll.u32 %v238, 16
      %v423 = vrot.slane %v421, 5
      %v424 = vsel %vm242, %v419, %v423
      %v425 = vshrl.u32 %v238, 16
      %v427 = vrot.slane %v425, 4
      %v428 = vor.u32 %v427, %v423
      %v429 = vrot.slane %v428, 4
      %v431 = vshll.u32 %v239, 16
      %v433 = vrot.slane %v431, 5
      %v434 = vsel %vm242, %v429, %v433
      %vm459 = vcmask 1042432
      %vm460 = vcmask 1046532
      %vm461 = vmor %vm459, %vm460
      %v462 = vrot.slane %v216, 5
      %v463 = vrot.slane %v462, 4
      %v464 = vrot.slane %v217, 5
      %v465 = vsel %vm461, %v463, %v464
      %v466 = vrot.slane %v464, 4
      %v467 = vrot.slane %v218, 5
      %v468 = vsel %vm461, %v466, %v467
      %v469 = vrot.slane %v219, 5
      %v470 = vrot.slane %v469, 4
      %v471 = vrot.slane %v220, 5
      %v472 = vsel %vm461, %v470, %v471
      %v473 = vrot.slane %v471, 4
      %v474 = vrot.slane %v221, 5
      %v475 = vsel %vm461, %v473, %v474
      %v476 = vrot.slane %v222, 5
      %v477 = vrot.slane %v476, 4
      %v478 = vrot.slane %v223, 5
      %v479 = vsel %vm461, %v477, %v478
      %v480 = vrot.slane %v478, 4
      %v481 = vrot.slane %v224, 5
      %v482 = vsel %vm461, %v480, %v481
      %v483 = vrot.slane %v225, 5
      %v484 = vrot.slane %v483, 4
      %v485 = vrot.slane %v226, 5
      %v486 = vsel %vm461, %v484, %v485
      %v487 = vrot.slane %v485, 4
      %v488 = vrot.slane %v227, 5
      %v489 = vsel %vm461, %v487, %v488
      %v490 = vrot.slane %v228, 5
      %v491 = vrot.slane %v490, 4
      %v492 = vrot.slane %v229, 5
      %v493 = vsel %vm461, %v491, %v492
      %v494 = vrot.slane %v492, 4
      %v495 = vrot.slane %v230, 5
      %v496 = vsel %vm461, %v494, %v495
      %v497 = vrot.slane %v231, 5
      %v498 = vrot.slane %v497, 4
      %v499 = vrot.slane %v232, 5
      %v500 = vsel %vm461, %v498, %v499
      %v501 = vrot.slane %v499, 4
      %v502 = vrot.slane %v233, 5
      %v503 = vsel %vm461, %v501, %v502
      %v504 = vrot.slane %v234, 5
      %v505 = vrot.slane %v504, 4
      %v506 = vrot.slane %v235, 5
      %v507 = vsel %vm461, %v505, %v506
      %v508 = vrot.slane %v506, 4
      %v509 = vrot.slane %v236, 5
      %v510 = vsel %vm461, %v508, %v509
      %v511 = vrot.slane %v237, 5
      %v512 = vrot.slane %v511, 4
      %v513 = vrot.slane %v238, 5
      %v514 = vsel %vm461, %v512, %v513
      %v515 = vrot.slane %v513, 4
      %v516 = vrot.slane %v239, 5
      %v517 = vsel %vm461, %v515, %v516
      %v518 = vld [vmem:[%s1] sm:$0xff]
      %v519 = vld [vmem:[%s1 + $0x8] sm:$0xff]
      %v520 = vld [vmem:[%s1 + $0x10] sm:$0xff]
      %v521 = vld [vmem:[%s1 + $0x18] sm:$0xff]
      %v522 = vld [vmem:[%s1 + $0x20] sm:$0xff]
      %v523 = vld [vmem:[%s1 + $0x28] sm:$0xff]
      %v524 = vld [vmem:[%s1 + $0x30] sm:$0xff]
      %v525 = vld [vmem:[%s1 + $0x38] sm:$0xff]
      %v526 = vld [vmem:[%s1 + $0x40] sm:$0xff]
      %v527 = vld [vmem:[%s1 + $0x48] sm:$0xff]
      %v528 = vld [vmem:[%s1 + $0x50] sm:$0xff]
      %v529 = vld [vmem:[%s1 + $0x58] sm:$0xff]
      %v530 = vld [vmem:[%s1 + $0x60] sm:$0xff]
      %v531 = vld [vmem:[%s1 + $0x68] sm:$0xff]
      %v532 = vld [vmem:[%s1 + $0x70] sm:$0xff]
      %v533 = vld [vmem:[%s1 + $0x78] sm:$0xff]
      %v534 = vld [vmem:[%s1 + $0x80] sm:$0xff]
      %v535 = vld [vmem:[%s1 + $0x88] sm:$0xff]
      %v536 = vld [vmem:[%s1 + $0x90] sm:$0xff]
      %v537 = vld [vmem:[%s1 + $0x98] sm:$0xff]
      %v538 = vld [vmem:[%s1 + $0xa0] sm:$0xff]
      %v539 = vld [vmem:[%s1 + $0xa8] sm:$0xff]
      %v540 = vld [vmem:[%s1 + $0xb0] sm:$0xff]
      %v541 = vld [vmem:[%s1 + $0xb8] sm:$0xff]
      %s542 = scalar_lea.vmem %s1, 192
      %v543 = vld [vmem:[%s542] sm:$0xff]
      %v544 = vld [vmem:[%s542 + $0x8] sm:$0xff]
      %v545 = vld [vmem:[%s542 + $0x10] sm:$0xff]
      %v546 = vld [vmem:[%s542 + $0x18] sm:$0xff]
      %v547 = vld [vmem:[%s542 + $0x20] sm:$0xff]
      %v548 = vld [vmem:[%s542 + $0x28] sm:$0xff]
      %v549 = vld [vmem:[%s542 + $0x30] sm:$0xff]
      %v550 = vld [vmem:[%s542 + $0x38] sm:$0xff]
      %v551 = vld [vmem:[%s542 + $0x40] sm:$0xff]
      %v552 = vld [vmem:[%s542 + $0x48] sm:$0xff]
      %v553 = vld [vmem:[%s542 + $0x50] sm:$0xff]
      %v554 = vld [vmem:[%s542 + $0x58] sm:$0xff]
      %v555 = vld [vmem:[%s542 + $0x60] sm:$0xff]
      %v556 = vld [vmem:[%s542 + $0x68] sm:$0xff]
      %v557 = vld [vmem:[%s542 + $0x70] sm:$0xff]
      %v558 = vld [vmem:[%s542 + $0x78] sm:$0xff]
      %v559 = vld [vmem:[%s542 + $0x80] sm:$0xff]
      %v560 = vld [vmem:[%s542 + $0x88] sm:$0xff]
      %v561 = vld [vmem:[%s542 + $0x90] sm:$0xff]
      %v562 = vld [vmem:[%s542 + $0x98] sm:$0xff]
      %v563 = vld [vmem:[%s542 + $0xa0] sm:$0xff]
      %v564 = vld [vmem:[%s542 + $0xa8] sm:$0xff]
      %v565 = vld [vmem:[%s542 + $0xb0] sm:$0xff]
      %v566 = vld [vmem:[%s542 + $0xb8] sm:$0xff]
      %v567 = vunpack.c.l.b16 %v256
      %v568 = vunpack.c.h.b16 %v256
      %v569 = vunpack.c.l.b16 %v266
      %v570 = vunpack.c.h.b16 %v266
      %v571 = vunpack.c.l.b16 %v280
      %v572 = vunpack.c.h.b16 %v280
      %v573 = vunpack.c.l.b16 %v290
      %v574 = vunpack.c.h.b16 %v290
      %v575 = vunpack.c.l.b16 %v304
      %v576 = vunpack.c.h.b16 %v304
      %v577 = vunpack.c.l.b16 %v314
      %v578 = vunpack.c.h.b16 %v314
      %v579 = vunpack.c.l.b16 %v328
      %v580 = vunpack.c.h.b16 %v328
      %v581 = vunpack.c.l.b16 %v338
      %v582 = vunpack.c.h.b16 %v338
      %v583 = vunpack.c.l.b16 %v352
      %v584 = vunpack.c.h.b16 %v352
      %v585 = vunpack.c.l.b16 %v362
      %v586 = vunpack.c.h.b16 %v362
      %v587 = vunpack.c.l.b16 %v376
      %v588 = vunpack.c.h.b16 %v376
      %v589 = vunpack.c.l.b16 %v386
      %v590 = vunpack.c.h.b16 %v386
      %v591 = vunpack.c.l.b16 %v400
      %v592 = vunpack.c.h.b16 %v400
      %v593 = vunpack.c.l.b16 %v410
      %v594 = vunpack.c.h.b16 %v410
      %v595 = vunpack.c.l.b16 %v424
      %v596 = vunpack.c.h.b16 %v424
      %v597 = vunpack.c.l.b16 %v434
      %v598 = vunpack.c.h.b16 %v434
      %v599 = vpack.c.b16 %v569, %v567
      %v600 = vpack.c.b16 %v570, %v568
      %v601 = vpack.c.b16 %v573, %v571
      %v602 = vpack.c.b16 %v574, %v572
      %v603 = vpack.c.b16 %v577, %v575
      %v604 = vpack.c.b16 %v578, %v576
      %v605 = vpack.c.b16 %v581, %v579
      %v606 = vpack.c.b16 %v582, %v580
      %v607 = vpack.c.b16 %v585, %v583
      %v608 = vpack.c.b16 %v586, %v584
      %v609 = vpack.c.b16 %v589, %v587
      %v610 = vpack.c.b16 %v590, %v588
      %v611 = vpack.c.b16 %v593, %v591
      %v612 = vpack.c.b16 %v594, %v592
      %v613 = vpack.c.b16 %v597, %v595
      %v614 = vpack.c.b16 %v598, %v596
      %v647 = vunpack.c.l.b16 %v543
      %v648 = vunpack.c.h.b16 %v543
      %v649 = vunpack.c.l.b16 %v544
      %v650 = vunpack.c.h.b16 %v544
      %v651 = vunpack.c.l.b16 %v545
      %v652 = vunpack.c.h.b16 %v545
      %v653 = vunpack.c.l.b16 %v546
      %v654 = vunpack.c.h.b16 %v546
      %v655 = vunpack.c.l.b16 %v547
      %v656 = vunpack.c.h.b16 %v547
      %v657 = vunpack.c.l.b16 %v548
      %v658 = vunpack.c.h.b16 %v548
      %v659 = vunpack.c.l.b16 %v549
      %v660 = vunpack.c.h.b16 %v549
      %v661 = vunpack.c.l.b16 %v550
      %v662 = vunpack.c.h.b16 %v550
      %v663 = vunpack.c.l.b16 %v551
      %v664 = vunpack.c.h.b16 %v551
      %v665 = vunpack.c.l.b16 %v552
      %v666 = vunpack.c.h.b16 %v552
      %v667 = vunpack.c.l.b16 %v553
      %v668 = vunpack.c.h.b16 %v553
      %v669 = vunpack.c.l.b16 %v554
      %v670 = vunpack.c.h.b16 %v554
      %v671 = vunpack.c.l.b16 %v555
      %v672 = vunpack.c.h.b16 %v555
      %v673 = vunpack.c.l.b16 %v556
      %v674 = vunpack.c.h.b16 %v556
      %v675 = vunpack.c.l.b16 %v557
      %v676 = vunpack.c.h.b16 %v557
      %v677 = vunpack.c.l.b16 %v558
      %v678 = vunpack.c.h.b16 %v558
      %v679 = vunpack.c.l.b16 %v559
      %v680 = vunpack.c.h.b16 %v559
      %v681 = vunpack.c.l.b16 %v560
      %v682 = vunpack.c.h.b16 %v560
      %v683 = vunpack.c.l.b16 %v561
      %v684 = vunpack.c.h.b16 %v561
      %v685 = vunpack.c.l.b16 %v562
      %v686 = vunpack.c.h.b16 %v562
      %v687 = vunpack.c.l.b16 %v563
      %v688 = vunpack.c.h.b16 %v563
      %v689 = vunpack.c.l.b16 %v564
      %v690 = vunpack.c.h.b16 %v564
      %v691 = vunpack.c.l.b16 %v565
      %v692 = vunpack.c.h.b16 %v565
      %v693 = vunpack.c.l.b16 %v566
      %v694 = vunpack.c.h.b16 %v566
      %v695 = vpack.c.b16 %v649, %v647
      %v696 = vpack.c.b16 %v650, %v648
      %v697 = vpack.c.b16 %v653, %v651
      %v698 = vpack.c.b16 %v654, %v652
      %v699 = vpack.c.b16 %v657, %v655
      %v700 = vpack.c.b16 %v658, %v656
      %v701 = vpack.c.b16 %v661, %v659
      %v702 = vpack.c.b16 %v662, %v660
      %v703 = vpack.c.b16 %v665, %v663
      %v704 = vpack.c.b16 %v666, %v664
      %v705 = vpack.c.b16 %v669, %v667
      %v706 = vpack.c.b16 %v670, %v668
      %v707 = vpack.c.b16 %v673, %v671
      %v708 = vpack.c.b16 %v674, %v672
      %v709 = vpack.c.b16 %v677, %v675
      %v710 = vpack.c.b16 %v678, %v676
      %v711 = vpack.c.b16 %v681, %v679
      %v712 = vpack.c.b16 %v682, %v680
      %v713 = vpack.c.b16 %v685, %v683
      %v714 = vpack.c.b16 %v686, %v684
      %v715 = vpack.c.b16 %v689, %v687
      %v716 = vpack.c.b16 %v690, %v688
      %v717 = vpack.c.b16 %v693, %v691
      %v718 = vpack.c.b16 %v694, %v692
      %vm743 = vcmask 523264
      %v745 = vsel %vm743, %v600, 0
      %v748 = vsel %vm743, %v602, 0
      %v751 = vsel %vm743, %v604, 0
      %v754 = vsel %vm743, %v606, 0
      %v757 = vsel %vm743, %v608, 0
      %v760 = vsel %vm743, %v610, 0
      %v763 = vsel %vm743, %v612, 0
      %v766 = vsel %vm743, %v614, 0
      %768 = vmatprep.subr.bf16.mxu0 %v696
      %769 = vmatpush1.bf16.msra.mxu0 %v695
      %770 = vmatprep.subr.bf16.mxu0 %v698
      %771 = vmatpush1.bf16.msra.mxu0 %v697
      %772 = vmatprep.subr.bf16.mxu0 %v700
      %773 = vmatpush1.bf16.msra.mxu0 %v699
      %774 = vmatprep.subr.bf16.mxu0 %v702
      %775 = vmatpush1.bf16.msra.mxu0 %v701
      %776 = vmatprep.subr.bf16.mxu0 %v704
      %777 = vmatpush1.bf16.msra.mxu0 %v703
      %778 = vmatprep.subr.bf16.mxu0 %v706
      %779 = vmatpush1.bf16.msra.mxu0 %v705
      %780 = vmatprep.subr.bf16.mxu0 %v708
      %781 = vmatpush1.bf16.msra.mxu0 %v707
      %782 = vmatprep.subr.bf16.mxu0 %v710
      %783 = vmatpush1.bf16.msra.mxu0 %v709
      %784 = vmatprep.subr.bf16.mxu0 %v712
      %785 = vmatpush1.bf16.msra.mxu0 %v711
      %786 = vmatprep.subr.bf16.mxu0 %v714
      %787 = vmatpush1.bf16.msra.mxu0 %v713
      %788 = vmatprep.subr.bf16.mxu0 %v716
      %789 = vmatpush1.bf16.msra.mxu0 %v715
      %790 = vmatprep.subr.bf16.mxu0 %v718
      %791 = vmatpush1.bf16.msra.mxu0 %v717
      %792 = vmatprep.subr.bf16.mxu0 0
      %793 = vmatpush1.bf16.msra.mxu0 0
      %794 = vmatprep.subr.bf16.mxu0 0
      %795 = vmatpush1.bf16.msra.mxu0 0
      %796 = vmatprep.subr.bf16.mxu0 0
      %797 = vmatpush1.bf16.msra.mxu0 0
      %798 = vmatprep.subr.bf16.mxu0 0
      %799 = vmatpush1.bf16.msra.mxu0 0
      %800 = vmatprep.mubr.bf16.mxu0 %v745
      %801 = vmatmul.mubr.bf16.gmra.mrb[0].mxu0 %v599
      %v802 = vpop.f32.mrb[0].mxu0
      %v803 = vadd.f32 0.0, %v802
      %v804 = vpop.f32.mrb[0].mxu0
      %v805 = vadd.f32 0.0, %v804
      %v806 = vpop.f32.mrb[0].mxu0
      %v807 = vadd.f32 0.0, %v806
      %v808 = vpop.f32.mrb[0].mxu0
      %v809 = vadd.f32 0.0, %v808
      %810 = vmatprep.mubr.bf16.mxu0 %v748
      %811 = vmatmul.mubr.bf16.gmra.mrb[0].mxu0 %v601
      %v812 = vpop.f32.mrb[0].mxu0
      %v813 = vadd.f32 0.0, %v812
      %v814 = vpop.f32.mrb[0].mxu0
      %v815 = vadd.f32 0.0, %v814
      %v816 = vpop.f32.mrb[0].mxu0
      %v817 = vadd.f32 0.0, %v816
      %v818 = vpop.f32.mrb[0].mxu0
      %v819 = vadd.f32 0.0, %v818
      %820 = vmatprep.mubr.bf16.mxu0 %v751
      %821 = vmatmul.mubr.bf16.gmra.mrb[0].mxu0 %v603
      %v822 = vpop.f32.mrb[0].mxu0
      %v823 = vadd.f32 0.0, %v822
      %v824 = vpop.f32.mrb[0].mxu0
      %v825 = vadd.f32 0.0, %v824
      %v826 = vpop.f32.mrb[0].mxu0
      %v827 = vadd.f32 0.0, %v826
      %v828 = vpop.f32.mrb[0].mxu0
      %v829 = vadd.f32 0.0, %v828
      %830 = vmatprep.mubr.bf16.mxu0 %v754
      %831 = vmatmul.mubr.bf16.gmra.mrb[0].mxu0 %v605
      %v832 = vpop.f32.mrb[0].mxu0
      %v833 = vadd.f32 0.0, %v832
      %v834 = vpop.f32.mrb[0].mxu0
      %v835 = vadd.f32 0.0, %v834
      %v836 = vpop.f32.mrb[0].mxu0
      %v837 = vadd.f32 0.0, %v836
      %v838 = vpop.f32.mrb[0].mxu0
      %v839 = vadd.f32 0.0, %v838
      %840 = vmatprep.mubr.bf16.mxu0 %v757
      %841 = vmatmul.mubr.bf16.gmra.mrb[0].mxu0 %v607
      %v842 = vpop.f32.mrb[0].mxu0
      %v843 = vadd.f32 0.0, %v842
      %v844 = vpop.f32.mrb[0].mxu0
      %v845 = vadd.f32 0.0, %v844
      %v846 = vpop.f32.mrb[0].mxu0
      %v847 = vadd.f32 0.0, %v846
      %v848 = vpop.f32.mrb[0].mxu0
      %v849 = vadd.f32 0.0, %v848
      %850 = vmatprep.mubr.bf16.mxu0 %v760
      %851 = vmatmul.mubr.bf16.gmra.mrb[0].mxu0 %v609
      %v852 = vpop.f32.mrb[0].mxu0
      %v853 = vadd.f32 0.0, %v852
      %v854 = vpop.f32.mrb[0].mxu0
      %v855 = vadd.f32 0.0, %v854
      %v856 = vpop.f32.mrb[0].mxu0
      %v857 = vadd.f32 0.0, %v856
      %v858 = vpop.f32.mrb[0].mxu0
      %v859 = vadd.f32 0.0, %v858
      %860 = vmatprep.mubr.bf16.mxu0 %v763
      %861 = vmatmul.mubr.bf16.gmra.mrb[0].mxu0 %v611
      %v862 = vpop.f32.mrb[0].mxu0
      %v863 = vadd.f32 0.0, %v862
      %v864 = vpop.f32.mrb[0].mxu0
      %v865 = vadd.f32 0.0, %v864
      %v866 = vpop.f32.mrb[0].mxu0
      %v867 = vadd.f32 0.0, %v866
      %v868 = vpop.f32.mrb[0].mxu0
      %v869 = vadd.f32 0.0, %v868
      %870 = vmatprep.mubr.bf16.mxu0 %v766
      %871 = vmatmul.mubr.bf16.gmra.mrb[0].mxu0 %v613
      %v872 = vpop.f32.mrb[0].mxu0
      %v873 = vadd.f32 0.0, %v872
      %v874 = vpop.f32.mrb[0].mxu0
      %v875 = vadd.f32 0.0, %v874
      %v876 = vpop.f32.mrb[0].mxu0
      %v877 = vadd.f32 0.0, %v876
      %v878 = vpop.f32.mrb[0].mxu0
      %v879 = vadd.f32 0.0, %v878
      %880 = vdwg.mxu0
      %v881 = vunpack.c.l.b16 %v216
      %v882 = vunpack.c.h.b16 %v216
      %v883 = vunpack.c.l.b16 %v217
      %v884 = vunpack.c.h.b16 %v217
      %v885 = vunpack.c.l.b16 %v219
      %v886 = vunpack.c.h.b16 %v219
      %v887 = vunpack.c.l.b16 %v220
      %v888 = vunpack.c.h.b16 %v220
      %v889 = vunpack.c.l.b16 %v222
      %v890 = vunpack.c.h.b16 %v222
      %v891 = vunpack.c.l.b16 %v223
      %v892 = vunpack.c.h.b16 %v223
      %v893 = vunpack.c.l.b16 %v225
      %v894 = vunpack.c.h.b16 %v225
      %v895 = vunpack.c.l.b16 %v226
      %v896 = vunpack.c.h.b16 %v226
      %v897 = vunpack.c.l.b16 %v228
      %v898 = vunpack.c.h.b16 %v228
      %v899 = vunpack.c.l.b16 %v229
      %v900 = vunpack.c.h.b16 %v229
      %v901 = vunpack.c.l.b16 %v231
      %v902 = vunpack.c.h.b16 %v231
      %v903 = vunpack.c.l.b16 %v232
      %v904 = vunpack.c.h.b16 %v232
      %v905 = vunpack.c.l.b16 %v234
      %v906 = vunpack.c.h.b16 %v234
      %v907 = vunpack.c.l.b16 %v235
      %v908 = vunpack.c.h.b16 %v235
      %v909 = vunpack.c.l.b16 %v237
      %v910 = vunpack.c.h.b16 %v237
      %v911 = vunpack.c.l.b16 %v238
      %v912 = vunpack.c.h.b16 %v238
      %v913 = vpack.c.b16 %v883, %v881
      %v914 = vpack.c.b16 %v884, %v882
      %v915 = vpack.c.b16 %v887, %v885
      %v916 = vpack.c.b16 %v888, %v886
      %v917 = vpack.c.b16 %v891, %v889
      %v918 = vpack.c.b16 %v892, %v890
      %v919 = vpack.c.b16 %v895, %v893
      %v920 = vpack.c.b16 %v896, %v894
      %v921 = vpack.c.b16 %v899, %v897
      %v922 = vpack.c.b16 %v900, %v898
      %v923 = vpack.c.b16 %v903, %v901
      %v924 = vpack.c.b16 %v904, %v902
      %v925 = vpack.c.b16 %v907, %v905
      %v926 = vpack.c.b16 %v908, %v906
      %v927 = vpack.c.b16 %v911, %v909
      %v928 = vpack.c.b16 %v912, %v910
      %v961 = vunpack.c.l.b16 %v518
      %v962 = vunpack.c.h.b16 %v518
      %v963 = vunpack.c.l.b16 %v519
      %v964 = vunpack.c.h.b16 %v519
      %v965 = vunpack.c.l.b16 %v520
      %v966 = vunpack.c.h.b16 %v520
      %v967 = vunpack.c.l.b16 %v521
      %v968 = vunpack.c.h.b16 %v521
      %v969 = vunpack.c.l.b16 %v522
      %v970 = vunpack.c.h.b16 %v522
      %v971 = vunpack.c.l.b16 %v523
      %v972 = vunpack.c.h.b16 %v523
      %v973 = vunpack.c.l.b16 %v524
      %v974 = vunpack.c.h.b16 %v524
      %v975 = vunpack.c.l.b16 %v525
      %v976 = vunpack.c.h.b16 %v525
      %v977 = vunpack.c.l.b16 %v526
      %v978 = vunpack.c.h.b16 %v526
      %v979 = vunpack.c.l.b16 %v527
      %v980 = vunpack.c.h.b16 %v527
      %v981 = vunpack.c.l.b16 %v528
      %v982 = vunpack.c.h.b16 %v528
      %v983 = vunpack.c.l.b16 %v529
      %v984 = vunpack.c.h.b16 %v529
      %v985 = vunpack.c.l.b16 %v530
      %v986 = vunpack.c.h.b16 %v530
      %v987 = vunpack.c.l.b16 %v531
      %v988 = vunpack.c.h.b16 %v531
      %v989 = vunpack.c.l.b16 %v532
      %v990 = vunpack.c.h.b16 %v532
      %v991 = vunpack.c.l.b16 %v533
      %v992 = vunpack.c.h.b16 %v533
      %v993 = vunpack.c.l.b16 %v534
      %v994 = vunpack.c.h.b16 %v534
      %v995 = vunpack.c.l.b16 %v535
      %v996 = vunpack.c.h.b16 %v535
      %v997 = vunpack.c.l.b16 %v536
      %v998 = vunpack.c.h.b16 %v536
      %v999 = vunpack.c.l.b16 %v537
      %v1000 = vunpack.c.h.b16 %v537
      %v1001 = vunpack.c.l.b16 %v538
      %v1002 = vunpack.c.h.b16 %v538
      %v1003 = vunpack.c.l.b16 %v539
      %v1004 = vunpack.c.h.b16 %v539
      %v1005 = vunpack.c.l.b16 %v540
      %v1006 = vunpack.c.h.b16 %v540
      %v1007 = vunpack.c.l.b16 %v541
      %v1008 = vunpack.c.h.b16 %v541
      %v1009 = vpack.c.b16 %v963, %v961
      %v1010 = vpack.c.b16 %v964, %v962
      %v1011 = vpack.c.b16 %v967, %v965
      %v1012 = vpack.c.b16 %v968, %v966
      %v1013 = vpack.c.b16 %v971, %v969
      %v1014 = vpack.c.b16 %v972, %v970
      %v1015 = vpack.c.b16 %v975, %v973
      %v1016 = vpack.c.b16 %v976, %v974
      %v1017 = vpack.c.b16 %v979, %v977
      %v1018 = vpack.c.b16 %v980, %v978
      %v1019 = vpack.c.b16 %v983, %v981
      %v1020 = vpack.c.b16 %v984, %v982
      %v1021 = vpack.c.b16 %v987, %v985
      %v1022 = vpack.c.b16 %v988, %v986
      %v1023 = vpack.c.b16 %v991, %v989
      %v1024 = vpack.c.b16 %v992, %v990
      %v1025 = vpack.c.b16 %v995, %v993
      %v1026 = vpack.c.b16 %v996, %v994
      %v1027 = vpack.c.b16 %v999, %v997
      %v1028 = vpack.c.b16 %v1000, %v998
      %v1029 = vpack.c.b16 %v1003, %v1001
      %v1030 = vpack.c.b16 %v1004, %v1002
      %v1031 = vpack.c.b16 %v1007, %v1005
      %v1032 = vpack.c.b16 %v1008, %v1006
      %v1058 = vsel %vm743, %v914, 0
      %v1061 = vsel %vm743, %v916, 0
      %v1064 = vsel %vm743, %v918, 0
      %v1067 = vsel %vm743, %v920, 0
      %v1070 = vsel %vm743, %v922, 0
      %v1073 = vsel %vm743, %v924, 0
      %v1076 = vsel %vm743, %v926, 0
      %v1079 = vsel %vm743, %v928, 0
      %1081 = vmatprep.subr.bf16.mxu0 %v1010
      %1082 = vmatpush1.bf16.msra.mxu0 %v1009
      %1083 = vmatprep.subr.bf16.mxu0 %v1012
      %1084 = vmatpush1.bf16.msra.mxu0 %v1011
      %1085 = vmatprep.subr.bf16.mxu0 %v1014
      %1086 = vmatpush1.bf16.msra.mxu0 %v1013
      %1087 = vmatprep.subr.bf16.mxu0 %v1016
      %1088 = vmatpush1.bf16.msra.mxu0 %v1015
      %1089 = vmatprep.subr.bf16.mxu0 %v1018
      %1090 = vmatpush1.bf16.msra.mxu0 %v1017
      %1091 = vmatprep.subr.bf16.mxu0 %v1020
      %1092 = vmatpush1.bf16.msra.mxu0 %v1019
      %1093 = vmatprep.subr.bf16.mxu0 %v1022
      %1094 = vmatpush1.bf16.msra.mxu0 %v1021
      %1095 = vmatprep.subr.bf16.mxu0 %v1024
      %1096 = vmatpush1.bf16.msra.mxu0 %v1023
      %1097 = vmatprep.subr.bf16.mxu0 %v1026
      %1098 = vmatpush1.bf16.msra.mxu0 %v1025
      %1099 = vmatprep.subr.bf16.mxu0 %v1028
      %1100 = vmatpush1.bf16.msra.mxu0 %v1027
      %1101 = vmatprep.subr.bf16.mxu0 %v1030
      %1102 = vmatpush1.bf16.msra.mxu0 %v1029
      %1103 = vmatprep.subr.bf16.mxu0 %v1032
      %1104 = vmatpush1.bf16.msra.mxu0 %v1031
      %1105 = vmatprep.subr.bf16.mxu0 0
      %1106 = vmatpush1.bf16.msra.mxu0 0
      %1107 = vmatprep.subr.bf16.mxu0 0
      %1108 = vmatpush1.bf16.msra.mxu0 0
      %1109 = vmatprep.subr.bf16.mxu0 0
      %1110 = vmatpush1.bf16.msra.mxu0 0
      %1111 = vmatprep.subr.bf16.mxu0 0
      %1112 = vmatpush1.bf16.msra.mxu0 0
      %1113 = vmatprep.mubr.bf16.mxu0 %v1058
      %1114 = vmatmul.mubr.bf16.gmra.mrb[0].mxu0 %v913
      %v1115 = vpop.f32.mrb[0].mxu0
      %v1116 = vadd.f32 %v803, %v1115
      %v1117 = vpop.f32.mrb[0].mxu0
      %v1118 = vadd.f32 %v805, %v1117
      %v1119 = vpop.f32.mrb[0].mxu0
      %v1120 = vadd.f32 %v807, %v1119
      %v1121 = vpop.f32.mrb[0].mxu0
      %v1122 = vadd.f32 %v809, %v1121
      %1123 = vmatprep.mubr.bf16.mxu0 %v1061
      %1124 = vmatmul.mubr.bf16.gmra.mrb[0].mxu0 %v915
      %v1125 = vpop.f32.mrb[0].mxu0
      %v1126 = vadd.f32 %v813, %v1125
      %v1127 = vpop.f32.mrb[0].mxu0
      %v1128 = vadd.f32 %v815, %v1127
      %v1129 = vpop.f32.mrb[0].mxu0
      %v1130 = vadd.f32 %v817, %v1129
      %v1131 = vpop.f32.mrb[0].mxu0
      %v1132 = vadd.f32 %v819, %v1131
      %1133 = vmatprep.mubr.bf16.mxu0 %v1064
      %1134 = vmatmul.mubr.bf16.gmra.mrb[0].mxu0 %v917
      %v1135 = vpop.f32.mrb[0].mxu0
      %v1136 = vadd.f32 %v823, %v1135
      %v1137 = vpop.f32.mrb[0].mxu0
      %v1138 = vadd.f32 %v825, %v1137
      %v1139 = vpop.f32.mrb[0].mxu0
      %v1140 = vadd.f32 %v827, %v1139
      %v1141 = vpop.f32.mrb[0].mxu0
      %v1142 = vadd.f32 %v829, %v1141
      %1143 = vmatprep.mubr.bf16.mxu0 %v1067
      %1144 = vmatmul.mubr.bf16.gmra.mrb[0].mxu0 %v919
      %v1145 = vpop.f32.mrb[0].mxu0
      %v1146 = vadd.f32 %v833, %v1145
      %v1147 = vpop.f32.mrb[0].mxu0
      %v1148 = vadd.f32 %v835, %v1147
      %v1149 = vpop.f32.mrb[0].mxu0
      %v1150 = vadd.f32 %v837, %v1149
      %v1151 = vpop.f32.mrb[0].mxu0
      %v1152 = vadd.f32 %v839, %v1151
      %1153 = vmatprep.mubr.bf16.mxu0 %v1070
      %1154 = vmatmul.mubr.bf16.gmra.mrb[0].mxu0 %v921
      %v1155 = vpop.f32.mrb[0].mxu0
      %v1156 = vadd.f32 %v843, %v1155
      %v1157 = vpop.f32.mrb[0].mxu0
      %v1158 = vadd.f32 %v845, %v1157
      %v1159 = vpop.f32.mrb[0].mxu0
      %v1160 = vadd.f32 %v847, %v1159
      %v1161 = vpop.f32.mrb[0].mxu0
      %v1162 = vadd.f32 %v849, %v1161
      %1163 = vmatprep.mubr.bf16.mxu0 %v1073
      %1164 = vmatmul.mubr.bf16.gmra.mrb[0].mxu0 %v923
      %v1165 = vpop.f32.mrb[0].mxu0
      %v1166 = vadd.f32 %v853, %v1165
      %v1167 = vpop.f32.mrb[0].mxu0
      %v1168 = vadd.f32 %v855, %v1167
      %v1169 = vpop.f32.mrb[0].mxu0
      %v1170 = vadd.f32 %v857, %v1169
      %v1171 = vpop.f32.mrb[0].mxu0
      %v1172 = vadd.f32 %v859, %v1171
      %1173 = vmatprep.mubr.bf16.mxu0 %v1076
      %1174 = vmatmul.mubr.bf16.gmra.mrb[0].mxu0 %v925
      %v1175 = vpop.f32.mrb[0].mxu0
      %v1176 = vadd.f32 %v863, %v1175
      %v1177 = vpop.f32.mrb[0].mxu0
      %v1178 = vadd.f32 %v865, %v1177
      %v1179 = vpop.f32.mrb[0].mxu0
      %v1180 = vadd.f32 %v867, %v1179
      %v1181 = vpop.f32.mrb[0].mxu0
      %v1182 = vadd.f32 %v869, %v1181
      %1183 = vmatprep.mubr.bf16.mxu0 %v1079
      %1184 = vmatmul.mubr.bf16.gmra.mrb[0].mxu0 %v927
      %v1185 = vpop.f32.mrb[0].mxu0
      %v1186 = vadd.f32 %v873, %v1185
      %v1187 = vpop.f32.mrb[0].mxu0
      %v1188 = vadd.f32 %v875, %v1187
      %v1189 = vpop.f32.mrb[0].mxu0
      %v1190 = vadd.f32 %v877, %v1189
      %v1191 = vpop.f32.mrb[0].mxu0
      %v1192 = vadd.f32 %v879, %v1191
      %1193 = vdwg.mxu0
      %s1194 = scalar_lea.vmem %s1, 384
      %v1195 = vld [vmem:[%s1194] sm:$0xff]
      %v1196 = vld [vmem:[%s1194 + $0x8] sm:$0xff]
      %v1197 = vld [vmem:[%s1194 + $0x10] sm:$0xff]
      %v1198 = vld [vmem:[%s1194 + $0x18] sm:$0xff]
      %v1199 = vld [vmem:[%s1194 + $0x20] sm:$0xff]
      %v1200 = vld [vmem:[%s1194 + $0x28] sm:$0xff]
      %v1201 = vld [vmem:[%s1194 + $0x30] sm:$0xff]
      %v1202 = vld [vmem:[%s1194 + $0x38] sm:$0xff]
      %v1203 = vld [vmem:[%s1194 + $0x40] sm:$0xff]
      %v1204 = vld [vmem:[%s1194 + $0x48] sm:$0xff]
      %v1205 = vld [vmem:[%s1194 + $0x50] sm:$0xff]
      %v1206 = vld [vmem:[%s1194 + $0x58] sm:$0xff]
      %v1207 = vld [vmem:[%s1194 + $0x60] sm:$0xff]
      %v1208 = vld [vmem:[%s1194 + $0x68] sm:$0xff]
      %v1209 = vld [vmem:[%s1194 + $0x70] sm:$0xff]
      %v1210 = vld [vmem:[%s1194 + $0x78] sm:$0xff]
      %v1211 = vld [vmem:[%s1194 + $0x80] sm:$0xff]
      %v1212 = vld [vmem:[%s1194 + $0x88] sm:$0xff]
      %v1213 = vld [vmem:[%s1194 + $0x90] sm:$0xff]
      %v1214 = vld [vmem:[%s1194 + $0x98] sm:$0xff]
      %v1215 = vld [vmem:[%s1194 + $0xa0] sm:$0xff]
      %v1216 = vld [vmem:[%s1194 + $0xa8] sm:$0xff]
      %v1217 = vld [vmem:[%s1194 + $0xb0] sm:$0xff]
      %v1218 = vld [vmem:[%s1194 + $0xb8] sm:$0xff]
      %v1219 = vunpack.c.l.b16 %v465
      %v1220 = vunpack.c.h.b16 %v465
      %v1221 = vunpack.c.l.b16 %v468
      %v1222 = vunpack.c.h.b16 %v468
      %v1223 = vunpack.c.l.b16 %v472
      %v1224 = vunpack.c.h.b16 %v472
      %v1225 = vunpack.c.l.b16 %v475
      %v1226 = vunpack.c.h.b16 %v475
      %v1227 = vunpack.c.l.b16 %v479
      %v1228 = vunpack.c.h.b16 %v479
      %v1229 = vunpack.c.l.b16 %v482
      %v1230 = vunpack.c.h.b16 %v482
      %v1231 = vunpack.c.l.b16 %v486
      %v1232 = vunpack.c.h.b16 %v486
      %v1233 = vunpack.c.l.b16 %v489
      %v1234 = vunpack.c.h.b16 %v489
      %v1235 = vunpack.c.l.b16 %v493
      %v1236 = vunpack.c.h.b16 %v493
      %v1237 = vunpack.c.l.b16 %v496
      %v1238 = vunpack.c.h.b16 %v496
      %v1239 = vunpack.c.l.b16 %v500
      %v1240 = vunpack.c.h.b16 %v500
      %v1241 = vunpack.c.l.b16 %v503
      %v1242 = vunpack.c.h.b16 %v503
      %v1243 = vunpack.c.l.b16 %v507
      %v1244 = vunpack.c.h.b16 %v507
      %v1245 = vunpack.c.l.b16 %v510
      %v1246 = vunpack.c.h.b16 %v510
      %v1247 = vunpack.c.l.b16 %v514
      %v1248 = vunpack.c.h.b16 %v514
      %v1249 = vunpack.c.l.b16 %v517
      %v1250 = vunpack.c.h.b16 %v517
      %v1251 = vpack.c.b16 %v1221, %v1219
      %v1252 = vpack.c.b16 %v1222, %v1220
      %v1253 = vpack.c.b16 %v1225, %v1223
      %v1254 = vpack.c.b16 %v1226, %v1224
      %v1255 = vpack.c.b16 %v1229, %v1227
      %v1256 = vpack.c.b16 %v1230, %v1228
      %v1257 = vpack.c.b16 %v1233, %v1231
      %v1258 = vpack.c.b16 %v1234, %v1232
      %v1259 = vpack.c.b16 %v1237, %v1235
      %v1260 = vpack.c.b16 %v1238, %v1236
      %v1261 = vpack.c.b16 %v1241, %v1239
      %v1262 = vpack.c.b16 %v1242, %v1240
      %v1263 = vpack.c.b16 %v1245, %v1243
      %v1264 = vpack.c.b16 %v1246, %v1244
      %v1265 = vpack.c.b16 %v1249, %v1247
      %v1266 = vpack.c.b16 %v1250, %v1248
      %v1299 = vunpack.c.l.b16 %v1195
      %v1300 = vunpack.c.h.b16 %v1195
      %v1301 = vunpack.c.l.b16 %v1196
      %v1302 = vunpack.c.h.b16 %v1196
      %v1303 = vunpack.c.l.b16 %v1197
      %v1304 = vunpack.c.h.b16 %v1197
      %v1305 = vunpack.c.l.b16 %v1198
      %v1306 = vunpack.c.h.b16 %v1198
      %v1307 = vunpack.c.l.b16 %v1199
      %v1308 = vunpack.c.h.b16 %v1199
      %v1309 = vunpack.c.l.b16 %v1200
      %v1310 = vunpack.c.h.b16 %v1200
      %v1311 = vunpack.c.l.b16 %v1201
      %v1312 = vunpack.c.h.b16 %v1201
      %v1313 = vunpack.c.l.b16 %v1202
      %v1314 = vunpack.c.h.b16 %v1202
      %v1315 = vunpack.c.l.b16 %v1203
      %v1316 = vunpack.c.h.b16 %v1203
      %v1317 = vunpack.c.l.b16 %v1204
      %v1318 = vunpack.c.h.b16 %v1204
      %v1319 = vunpack.c.l.b16 %v1205
      %v1320 = vunpack.c.h.b16 %v1205
      %v1321 = vunpack.c.l.b16 %v1206
      %v1322 = vunpack.c.h.b16 %v1206
      %v1323 = vunpack.c.l.b16 %v1207
      %v1324 = vunpack.c.h.b16 %v1207
      %v1325 = vunpack.c.l.b16 %v1208
      %v1326 = vunpack.c.h.b16 %v1208
      %v1327 = vunpack.c.l.b16 %v1209
      %v1328 = vunpack.c.h.b16 %v1209
      %v1329 = vunpack.c.l.b16 %v1210
      %v1330 = vunpack.c.h.b16 %v1210
      %v1331 = vunpack.c.l.b16 %v1211
      %v1332 = vunpack.c.h.b16 %v1211
      %v1333 = vunpack.c.l.b16 %v1212
      %v1334 = vunpack.c.h.b16 %v1212
      %v1335 = vunpack.c.l.b16 %v1213
      %v1336 = vunpack.c.h.b16 %v1213
      %v1337 = vunpack.c.l.b16 %v1214
      %v1338 = vunpack.c.h.b16 %v1214
      %v1339 = vunpack.c.l.b16 %v1215
      %v1340 = vunpack.c.h.b16 %v1215
      %v1341 = vunpack.c.l.b16 %v1216
      %v1342 = vunpack.c.h.b16 %v1216
      %v1343 = vunpack.c.l.b16 %v1217
      %v1344 = vunpack.c.h.b16 %v1217
      %v1345 = vunpack.c.l.b16 %v1218
      %v1346 = vunpack.c.h.b16 %v1218
      %v1347 = vpack.c.b16 %v1301, %v1299
      %v1348 = vpack.c.b16 %v1302, %v1300
      %v1349 = vpack.c.b16 %v1305, %v1303
      %v1350 = vpack.c.b16 %v1306, %v1304
      %v1351 = vpack.c.b16 %v1309, %v1307
      %v1352 = vpack.c.b16 %v1310, %v1308
      %v1353 = vpack.c.b16 %v1313, %v1311
      %v1354 = vpack.c.b16 %v1314, %v1312
      %v1355 = vpack.c.b16 %v1317, %v1315
      %v1356 = vpack.c.b16 %v1318, %v1316
      %v1357 = vpack.c.b16 %v1321, %v1319
      %v1358 = vpack.c.b16 %v1322, %v1320
      %v1359 = vpack.c.b16 %v1325, %v1323
      %v1360 = vpack.c.b16 %v1326, %v1324
      %v1361 = vpack.c.b16 %v1329, %v1327
      %v1362 = vpack.c.b16 %v1330, %v1328
      %v1363 = vpack.c.b16 %v1333, %v1331
      %v1364 = vpack.c.b16 %v1334, %v1332
      %v1365 = vpack.c.b16 %v1337, %v1335
      %v1366 = vpack.c.b16 %v1338, %v1336
      %v1367 = vpack.c.b16 %v1341, %v1339
      %v1368 = vpack.c.b16 %v1342, %v1340
      %v1369 = vpack.c.b16 %v1345, %v1343
      %v1370 = vpack.c.b16 %v1346, %v1344
      %v1396 = vsel %vm743, %v1252, 0
      %v1399 = vsel %vm743, %v1254, 0
      %v1402 = vsel %vm743, %v1256, 0
      %v1405 = vsel %vm743, %v1258, 0
      %v1408 = vsel %vm743, %v1260, 0
      %v1411 = vsel %vm743, %v1262, 0
      %v1414 = vsel %vm743, %v1264, 0
      %v1417 = vsel %vm743, %v1266, 0
      %1419 = vmatprep.subr.bf16.mxu0 %v1348
      %1420 = vmatpush1.bf16.msra.mxu0 %v1347
      %1421 = vmatprep.subr.bf16.mxu0 %v1350
      %1422 = vmatpush1.bf16.msra.mxu0 %v1349
      %1423 = vmatprep.subr.bf16.mxu0 %v1352
      %1424 = vmatpush1.bf16.msra.mxu0 %v1351
      %1425 = vmatprep.subr.bf16.mxu0 %v1354
      %1426 = vmatpush1.bf16.msra.mxu0 %v1353
      %1427 = vmatprep.subr.bf16.mxu0 %v1356
      %1428 = vmatpush1.bf16.msra.mxu0 %v1355
      %1429 = vmatprep.subr.bf16.mxu0 %v1358
      %1430 = vmatpush1.bf16.msra.mxu0 %v1357
      %1431 = vmatprep.subr.bf16.mxu0 %v1360
      %1432 = vmatpush1.bf16.msra.mxu0 %v1359
      %1433 = vmatprep.subr.bf16.mxu0 %v1362
      %1434 = vmatpush1.bf16.msra.mxu0 %v1361
      %1435 = vmatprep.subr.bf16.mxu0 %v1364
      %1436 = vmatpush1.bf16.msra.mxu0 %v1363
      %1437 = vmatprep.subr.bf16.mxu0 %v1366
      %1438 = vmatpush1.bf16.msra.mxu0 %v1365
      %1439 = vmatprep.subr.bf16.mxu0 %v1368
      %1440 = vmatpush1.bf16.msra.mxu0 %v1367
      %1441 = vmatprep.subr.bf16.mxu0 %v1370
      %1442 = vmatpush1.bf16.msra.mxu0 %v1369
      %1443 = vmatprep.subr.bf16.mxu0 0
      %1444 = vmatpush1.bf16.msra.mxu0 0
      %1445 = vmatprep.subr.bf16.mxu0 0
      %1446 = vmatpush1.bf16.msra.mxu0 0
      %1447 = vmatprep.subr.bf16.mxu0 0
      %1448 = vmatpush1.bf16.msra.mxu0 0
      %1449 = vmatprep.subr.bf16.mxu0 0
      %1450 = vmatpush1.bf16.msra.mxu0 0
      %1451 = vmatprep.mubr.bf16.mxu0 %v1396
      %1452 = vmatmul.mubr.bf16.gmra.mrb[0].mxu0 %v1251
      %v1453 = vpop.f32.mrb[0].mxu0
      %v1454 = vadd.f32 0.0, %v1453
      %v1455 = vpop.f32.mrb[0].mxu0
      %v1456 = vadd.f32 0.0, %v1455
      %v1457 = vpop.f32.mrb[0].mxu0
      %v1458 = vadd.f32 0.0, %v1457
      %v1459 = vpop.f32.mrb[0].mxu0
      %v1460 = vadd.f32 0.0, %v1459
      %1461 = vmatprep.mubr.bf16.mxu0 %v1399
      %1462 = vmatmul.mubr.bf16.gmra.mrb[0].mxu0 %v1253
      %v1463 = vpop.f32.mrb[0].mxu0
      %v1464 = vadd.f32 0.0, %v1463
      %v1465 = vpop.f32.mrb[0].mxu0
      %v1466 = vadd.f32 0.0, %v1465
      %v1467 = vpop.f32.mrb[0].mxu0
      %v1468 = vadd.f32 0.0, %v1467
      %v1469 = vpop.f32.mrb[0].mxu0
      %v1470 = vadd.f32 0.0, %v1469
      %1471 = vmatprep.mubr.bf16.mxu0 %v1402
      %1472 = vmatmul.mubr.bf16.gmra.mrb[0].mxu0 %v1255
      %v1473 = vpop.f32.mrb[0].mxu0
      %v1474 = vadd.f32 0.0, %v1473
      %v1475 = vpop.f32.mrb[0].mxu0
      %v1476 = vadd.f32 0.0, %v1475
      %v1477 = vpop.f32.mrb[0].mxu0
      %v1478 = vadd.f32 0.0, %v1477
      %v1479 = vpop.f32.mrb[0].mxu0
      %v1480 = vadd.f32 0.0, %v1479
      %1481 = vmatprep.mubr.bf16.mxu0 %v1405
      %1482 = vmatmul.mubr.bf16.gmra.mrb[0].mxu0 %v1257
      %v1483 = vpop.f32.mrb[0].mxu0
      %v1484 = vadd.f32 0.0, %v1483
      %v1485 = vpop.f32.mrb[0].mxu0
      %v1486 = vadd.f32 0.0, %v1485
      %v1487 = vpop.f32.mrb[0].mxu0
      %v1488 = vadd.f32 0.0, %v1487
      %v1489 = vpop.f32.mrb[0].mxu0
      %v1490 = vadd.f32 0.0, %v1489
      %1491 = vmatprep.mubr.bf16.mxu0 %v1408
      %1492 = vmatmul.mubr.bf16.gmra.mrb[0].mxu0 %v1259
      %v1493 = vpop.f32.mrb[0].mxu0
      %v1494 = vadd.f32 0.0, %v1493
      %v1495 = vpop.f32.mrb[0].mxu0
      %v1496 = vadd.f32 0.0, %v1495
      %v1497 = vpop.f32.mrb[0].mxu0
      %v1498 = vadd.f32 0.0, %v1497
      %v1499 = vpop.f32.mrb[0].mxu0
      %v1500 = vadd.f32 0.0, %v1499
      %1501 = vmatprep.mubr.bf16.mxu0 %v1411
      %1502 = vmatmul.mubr.bf16.gmra.mrb[0].mxu0 %v1261
      %v1503 = vpop.f32.mrb[0].mxu0
      %v1504 = vadd.f32 0.0, %v1503
      %v1505 = vpop.f32.mrb[0].mxu0
      %v1506 = vadd.f32 0.0, %v1505
      %v1507 = vpop.f32.mrb[0].mxu0
      %v1508 = vadd.f32 0.0, %v1507
      %v1509 = vpop.f32.mrb[0].mxu0
      %v1510 = vadd.f32 0.0, %v1509
      %1511 = vmatprep.mubr.bf16.mxu0 %v1414
      %1512 = vmatmul.mubr.bf16.gmra.mrb[0].mxu0 %v1263
      %v1513 = vpop.f32.mrb[0].mxu0
      %v1514 = vadd.f32 0.0, %v1513
      %v1515 = vpop.f32.mrb[0].mxu0
      %v1516 = vadd.f32 0.0, %v1515
      %v1517 = vpop.f32.mrb[0].mxu0
      %v1518 = vadd.f32 0.0, %v1517
      %v1519 = vpop.f32.mrb[0].mxu0
      %v1520 = vadd.f32 0.0, %v1519
      %1521 = vmatprep.mubr.bf16.mxu0 %v1417
      %1522 = vmatmul.mubr.bf16.gmra.mrb[0].mxu0 %v1265
      %v1523 = vpop.f32.mrb[0].mxu0
      %v1524 = vadd.f32 0.0, %v1523
      %v1525 = vpop.f32.mrb[0].mxu0
      %v1526 = vadd.f32 0.0, %v1525
      %v1527 = vpop.f32.mrb[0].mxu0
      %v1528 = vadd.f32 0.0, %v1527
      %v1529 = vpop.f32.mrb[0].mxu0
      %v1530 = vadd.f32 0.0, %v1529
      %1531 = vdwg.mxu0
      %v1532 = vadd.f32 %v1116, %v1454
      %v1533 = vadd.f32 %v1118, %v1456
      %v1534 = vadd.f32 %v1120, %v1458
      %v1535 = vadd.f32 %v1122, %v1460
      %v1536 = vadd.f32 %v1126, %v1464
      %v1537 = vadd.f32 %v1128, %v1466
      %v1538 = vadd.f32 %v1130, %v1468
      %v1539 = vadd.f32 %v1132, %v1470
      %v1540 = vadd.f32 %v1136, %v1474
      %v1541 = vadd.f32 %v1138, %v1476
      %v1542 = vadd.f32 %v1140, %v1478
      %v1543 = vadd.f32 %v1142, %v1480
      %v1544 = vadd.f32 %v1146, %v1484
      %v1545 = vadd.f32 %v1148, %v1486
      %v1546 = vadd.f32 %v1150, %v1488
      %v1547 = vadd.f32 %v1152, %v1490
      %v1548 = vadd.f32 %v1156, %v1494
      %v1549 = vadd.f32 %v1158, %v1496
      %v1550 = vadd.f32 %v1160, %v1498
      %v1551 = vadd.f32 %v1162, %v1500
      %v1552 = vadd.f32 %v1166, %v1504
      %v1553 = vadd.f32 %v1168, %v1506
      %v1554 = vadd.f32 %v1170, %v1508
      %v1555 = vadd.f32 %v1172, %v1510
      %v1556 = vadd.f32 %v1176, %v1514
      %v1557 = vadd.f32 %v1178, %v1516
      %v1558 = vadd.f32 %v1180, %v1518
      %v1559 = vadd.f32 %v1182, %v1520
      %v1560 = vadd.f32 %v1186, %v1524
      %v1561 = vadd.f32 %v1188, %v1526
      %v1562 = vadd.f32 %v1190, %v1528
      %v1563 = vadd.f32 %v1192, %v1530
      %v1564 = vld [vmem:[%s2] sm:$0x3]
      %v1566 = vlaneseq
      %v1567 = vshrl.u32 %v1566, 7
      %v1568 = vsub.s32 0, %v1567
      %v1569 = vrot.slane %v1564, %v1568
      %v1570 = vlaneseq
      %v1571 = vshrl.u32 %v1570, 7
      %v1572 = vsub.s32 1, %v1571
      %v1573 = vrot.slane %v1564, %v1572
      %v1576 = vadd.f32 %v1532, %v1569
      %v1577 = vadd.f32 %v1533, %v1573
      %v1578 = vadd.f32 %v1534, %v1569
      %v1579 = vadd.f32 %v1535, %v1573
      %v1580 = vadd.f32 %v1536, %v1569
      %v1581 = vadd.f32 %v1537, %v1573
      %v1582 = vadd.f32 %v1538, %v1569
      %v1583 = vadd.f32 %v1539, %v1573
      %v1584 = vadd.f32 %v1540, %v1569
      %v1585 = vadd.f32 %v1541, %v1573
      %v1586 = vadd.f32 %v1542, %v1569
      %v1587 = vadd.f32 %v1543, %v1573
      %v1588 = vadd.f32 %v1544, %v1569
      %v1589 = vadd.f32 %v1545, %v1573
      %v1590 = vadd.f32 %v1546, %v1569
      %v1591 = vadd.f32 %v1547, %v1573
      %v1592 = vadd.f32 %v1548, %v1569
      %v1593 = vadd.f32 %v1549, %v1573
      %v1594 = vadd.f32 %v1550, %v1569
      %v1595 = vadd.f32 %v1551, %v1573
      %v1596 = vadd.f32 %v1552, %v1569
      %v1597 = vadd.f32 %v1553, %v1573
      %v1598 = vadd.f32 %v1554, %v1569
      %v1599 = vadd.f32 %v1555, %v1573
      %v1600 = vadd.f32 %v1556, %v1569
      %v1601 = vadd.f32 %v1557, %v1573
      %v1602 = vadd.f32 %v1558, %v1569
      %v1603 = vadd.f32 %v1559, %v1573
      %v1604 = vadd.f32 %v1560, %v1569
      %v1605 = vadd.f32 %v1561, %v1573
      %v1606 = vadd.f32 %v1562, %v1569
      %v1607 = vadd.f32 %v1563, %v1573
      %v1608 = vpack.c.bf16 %v1578, %v1576
      %v1609 = vpack.c.bf16 %v1579, %v1577
      %v1610 = vpack.c.bf16 %v1582, %v1580
      %v1611 = vpack.c.bf16 %v1583, %v1581
      %v1612 = vpack.c.bf16 %v1586, %v1584
      %v1613 = vpack.c.bf16 %v1587, %v1585
      %v1614 = vpack.c.bf16 %v1590, %v1588
      %v1615 = vpack.c.bf16 %v1591, %v1589
      %v1616 = vpack.c.bf16 %v1594, %v1592
      %v1617 = vpack.c.bf16 %v1595, %v1593
      %v1618 = vpack.c.bf16 %v1598, %v1596
      %v1619 = vpack.c.bf16 %v1599, %v1597
      %v1620 = vpack.c.bf16 %v1602, %v1600
      %v1621 = vpack.c.bf16 %v1603, %v1601
      %v1622 = vpack.c.bf16 %v1606, %v1604
      %v1623 = vpack.c.bf16 %v1607, %v1605
      %v1640 = vunpack.c.l.b16 %v1608
      %v1641 = vunpack.c.l.b16 %v1609
      %v1642 = vunpack.c.h.b16 %v1608
      %v1643 = vunpack.c.h.b16 %v1609
      %v1644 = vunpack.c.l.b16 %v1610
      %v1645 = vunpack.c.l.b16 %v1611
      %v1646 = vunpack.c.h.b16 %v1610
      %v1647 = vunpack.c.h.b16 %v1611
      %v1648 = vunpack.c.l.b16 %v1612
      %v1649 = vunpack.c.l.b16 %v1613
      %v1650 = vunpack.c.h.b16 %v1612
      %v1651 = vunpack.c.h.b16 %v1613
      %v1652 = vunpack.c.l.b16 %v1614
      %v1653 = vunpack.c.l.b16 %v1615
      %v1654 = vunpack.c.h.b16 %v1614
      %v1655 = vunpack.c.h.b16 %v1615
      %v1656 = vunpack.c.l.b16 %v1616
      %v1657 = vunpack.c.l.b16 %v1617
      %v1658 = vunpack.c.h.b16 %v1616
      %v1659 = vunpack.c.h.b16 %v1617
      %v1660 = vunpack.c.l.b16 %v1618
      %v1661 = vunpack.c.l.b16 %v1619
      %v1662 = vunpack.c.h.b16 %v1618
      %v1663 = vunpack.c.h.b16 %v1619
      %v1664 = vunpack.c.l.b16 %v1620
      %v1665 = vunpack.c.l.b16 %v1621
      %v1666 = vunpack.c.h.b16 %v1620
      %v1667 = vunpack.c.h.b16 %v1621
      %v1668 = vunpack.c.l.b16 %v1622
      %v1669 = vunpack.c.l.b16 %v1623
      %v1670 = vunpack.c.h.b16 %v1622
      %v1671 = vunpack.c.h.b16 %v1623
      %v1672 = vpack.c.b16 %v1641, %v1640
      %v1673 = vpack.c.b16 %v1643, %v1642
      %v1674 = vpack.c.b16 %v1645, %v1644
      %v1675 = vpack.c.b16 %v1647, %v1646
      %v1676 = vpack.c.b16 %v1649, %v1648
      %v1677 = vpack.c.b16 %v1651, %v1650
      %v1678 = vpack.c.b16 %v1653, %v1652
      %v1679 = vpack.c.b16 %v1655, %v1654
      %v1680 = vpack.c.b16 %v1657, %v1656
      %v1681 = vpack.c.b16 %v1659, %v1658
      %v1682 = vpack.c.b16 %v1661, %v1660
      %v1683 = vpack.c.b16 %v1663, %v1662
      %v1684 = vpack.c.b16 %v1665, %v1664
      %v1685 = vpack.c.b16 %v1667, %v1666
      %v1686 = vpack.c.b16 %v1669, %v1668
      %v1687 = vpack.c.b16 %v1671, %v1670
      %1704 = vst [vmem:[%s213] sm:$0xff] %v1672
      %1705 = vst [vmem:[%s213 + $0x8] sm:$0xff] %v1673
      %1706 = vst [vmem:[%s213 + $0x10] sm:$0xff] %v1674
      %1707 = vst [vmem:[%s213 + $0x18] sm:$0xff] %v1675
      %1708 = vst [vmem:[%s213 + $0x20] sm:$0xff] %v1676
      %1709 = vst [vmem:[%s213 + $0x28] sm:$0xff] %v1677
      %1710 = vst [vmem:[%s213 + $0x30] sm:$0xff] %v1678
      %1711 = vst [vmem:[%s213 + $0x38] sm:$0xff] %v1679
      %1712 = vst [vmem:[%s213 + $0x40] sm:$0xff] %v1680
      %1713 = vst [vmem:[%s213 + $0x48] sm:$0xff] %v1681
      %1714 = vst [vmem:[%s213 + $0x50] sm:$0xff] %v1682
      %1715 = vst [vmem:[%s213 + $0x58] sm:$0xff] %v1683
      %1716 = vst [vmem:[%s213 + $0x60] sm:$0xff] %v1684
      %1717 = vst [vmem:[%s213 + $0x68] sm:$0xff] %v1685
      %1718 = vst [vmem:[%s213 + $0x70] sm:$0xff] %v1686
      %1719 = vst [vmem:[%s213 + $0x78] sm:$0xff] %v1687
      %s1720 = smul.u32 8, %s19
      %p1721 = scmp.lt.s32.totalorder %s18, 1
      %s1722 = scalar_select %p1721, %s18, 1
      %p1723 = scmp.lt.s32.totalorder %s1720, 15
      %s1724 = scalar_select %p1723, %s1720, 15
      %s1725 = smul.addr %s1724, 4
      %s1726 = smul.addr %s1722, 64
      %s1727 = sadd.s32 %s1725, %s1726
      %s1728 = smul.addr %s1727, 4
      %s1729 = scalar_lea.vmem %s3, %s1728
      // Predicated region
      $region33: #{upsample_forward.1} parent=31 // pred_check
        %p1730 = pneg %p116
      $region34: #{upsample_forward.1} parent=31 // pred_check_branch
        %1732 = sbr.rel (%p1730) target = $region36
      $region35: #{upsample_forward.1} parent=31 // pred_region
        %s1733 = smul.u32 8, %s19
      $region36: #{upsample_forward.1} parent=31 // pred_fallthru
        _
    $region32: #{upsample_forward.1} parent=5 // pred_fallthru
      _
    %p1734 = scmp.le.s32.totalorder 2, %s9
    // Predicated region
    $region37: #{upsample_forward.1} parent=5 // pred_check
      %p1735 = pneg %p1734
    $region38: #{upsample_forward.1} parent=5 // pred_check_branch
      %1737 = sbr.rel (%p1735) target = $region40
    $region39: #{upsample_forward.1} parent=5 // pred_region
      %s1738 = ssub.s32 %s9, 2
      // Predicated region
      $region41: #{upsample_forward.1} parent=39 // pred_check
        %p1739 = pneg %p122
      $region42: #{upsample_forward.1} parent=39 // pred_check_branch
        %1741 = sbr.rel (%p1739) target = $region44
      $region43: #{upsample_forward.1} parent=39 // pred_region
        %s1742 = smul.u32 8, %s21
        %p1743 = scmp.lt.s32.totalorder %s20, 1
        %s1744 = scalar_select %p1743, %s20, 1
        %p1745 = scmp.lt.s32.totalorder %s1742, 15
        %s1746 = scalar_select %p1745, %s1742, 15
        %s1747 = smul.addr %s1746, 4
        %s1748 = smul.addr %s1744, 64
        %s1749 = sadd.s32 %s1747, %s1748
        %s1750 = smul.addr %s1749, 4
        %s1751 = scalar_lea.vmem %s3, %s1750
      $region44: #{upsample_forward.1} parent=39 // pred_fallthru
        _
    $region40: #{upsample_forward.1} parent=5 // pred_fallthru
      _
  $region6: #{upsample_forward.1} parent=0 // loop_footer
    %s13 = sadd.s32 1, %s9
  $region7: #{upsample_forward.1} parent=0 // loop_footer_branch
    %8 = sbr.rel target = $region3
  $region8: #{upsample_forward.1} parent=0 // loop_exit
    _

</llo_original>
